<compile_context>
chip_gen: v5e
topology: v5e:2x2
jax: 0.10.0
libtpu: 0.0.40
codegen_flags: <defaults>
</compile_context>

<pallas_src>
import jax
import jax.numpy as jnp
from jax import lax
from jax.experimental import pallas as pl
from jax.experimental.pallas import tpu as pltpu


B_TILE = 8  # images per grid step (multiple of 8 sublanes)


# ----------------------------------------------------------------------------
# Kernel 1: conv3x3 (as im2col matmul) + bias + ReLU + global-average-pool
# ----------------------------------------------------------------------------
def _build_conv_pool(n_pad, hw, k, chid_pad):
    num_tiles = n_pad // B_TILE
    rows = B_TILE * hw

    def kernel(p_ref, wc_ref, bc_ref, pooled_ref):
        # [B_TILE*HW, K] bf16 @ [K, CHID_PAD] bf16 -> f32
        acc = jnp.dot(p_ref[...], wc_ref[...], preferred_element_type=jnp.float32)
        acc = jnp.maximum(acc + bc_ref[...], 0.0)
        # grouped global average pool: [B_TILE, HW, CHID_PAD] -> [B_TILE, CHID_PAD]
        pooled_ref[...] = jnp.mean(acc.reshape(B_TILE, hw, chid_pad), axis=1)

    cost = pl.CostEstimate(
        flops=2 * n_pad * hw * k * chid_pad,
        transcendentals=0,
        bytes_accessed=(n_pad * hw * k * 2          # bf16 patches
                        + k * chid_pad * 2          # bf16 conv weight
                        + chid_pad * 4              # bias
                        + n_pad * chid_pad * 4),    # pooled output
    )

    return pl.pallas_call(
        kernel,
        out_shape=jax.ShapeDtypeStruct((n_pad, chid_pad), jnp.float32),
        grid=(num_tiles,),
        in_specs=[
            # one batch-tile of im2col patches per step (lane dim = full K)
            pl.BlockSpec((rows, k), lambda i: (i, 0)),
            # resident weights / bias (constant block index)
            pl.BlockSpec((k, chid_pad), lambda i: (0, 0)),
            pl.BlockSpec((1, chid_pad), lambda i: (0, 0)),
        ],
        out_specs=pl.BlockSpec((B_TILE, chid_pad), lambda i: (i, 0)),
        compiler_params=pltpu.CompilerParams(
            # no cross-step carry -> batch-tile axis is independent
            dimension_semantics=("parallel",),
            vmem_limit_bytes=32 * 1024 * 1024,
        ),
        cost_estimate=cost,
    )


# ----------------------------------------------------------------------------
# Kernel 2: fused mean/log-var head + aleatoric normalization (tiny)
# ----------------------------------------------------------------------------
def _build_head(n_pad, n_valid, chid_pad, nc):
    head_out = 2 * nc

    def kernel(pooled_ref, wh_ref, bh_ref, out_ref):
        head = jnp.dot(pooled_ref[...].astype(jnp.bfloat16), wh_ref[...],
                       preferred_element_type=jnp.float32) + bh_ref[...]
        col = lax.broadcasted_iota(jnp.int32, head.shape, 1)
        row = lax.broadcasted_iota(jnp.int32, head.shape, 0)
        is_var = col >= nc                          # right half = log-variance
        valid = is_var & (row < n_valid)            # ignore batch-padding rows
        max_lv = jnp.max(jnp.where(valid, head, -jnp.inf))
        # mean passthrough | exp(lv - max(lv)) == exp(lv)/max(exp(lv))
        out_ref[...] = jnp.where(is_var, jnp.exp(head - max_lv), head)

    return pl.pallas_call(
        kernel,
        out_shape=jax.ShapeDtypeStruct((n_pad, head_out), jnp.float32),
        grid=(1,),
        in_specs=[
            pl.BlockSpec((n_pad, chid_pad), lambda i: (0, 0)),
            pl.BlockSpec((chid_pad, head_out), lambda i: (0, 0)),
            pl.BlockSpec((1, head_out), lambda i: (0, 0)),
        ],
        out_specs=pl.BlockSpec((n_pad, head_out), lambda i: (0, 0)),
        compiler_params=pltpu.CompilerParams(
            dimension_semantics=("arbitrary",),
        ),
    )


# ----------------------------------------------------------------------------
# Model wrapper (eval mode, mode='aleatoric'); accepts PyTorch-style NCHW input
# ----------------------------------------------------------------------------
@jax.jit
def model_forward_aleatoric(x_nchw, params):
    n, cin, h, w = x_nchw.shape
    hw = h * w
    k = 9 * cin
    chid_pad = params["wc"].shape[1]
    nc = params["wh"].shape[1] // 2
    n_pad = ((n + B_TILE - 1) // B_TILE) * B_TILE

    # NHWC + single bf16 cast + halo pad + zero-pad batch to a B_TILE multiple.
    x_nhwc = jnp.transpose(x_nchw, (0, 2, 3, 1)).astype(jnp.bfloat16)
    x_pad = jnp.pad(x_nhwc, ((0, n_pad - n), (1, 1), (1, 1), (0, 0)))

    # im2col in XLA -> dense [N_pad*HW, 9*CIN] bf16 patch stream for the MXU.
    cols = [x_pad[:, dh:dh + h, dw:dw + w, :]
            for dh in range(3) for dw in range(3)]
    patches = jnp.concatenate(cols, axis=3).reshape(n_pad * hw, k)

    pooled = _build_conv_pool(n_pad, hw, k, chid_pad)(
        patches, params["wc"], params["bc"])
    packed = _build_head(n_pad, n, chid_pad, nc)(
        pooled, params["wh"], params["bh"])

    return {"mean": packed[:n, :nc], "var": packed[:n, nc:]}


def init_params(key, cin=4, chid=32, num_classes=16, chid_pad=128):
    k1, k2, k3, k4, k5 = jax.random.split(key, 5)
    # conv weight stored directly in im2col layout [kh*kw*Cin, Cout]
    w_conv = 0.1 * jax.random.normal(k1, (9 * cin, chid), jnp.float32)
    b_conv = 0.01 * jax.random.normal(k2, (1, chid), jnp.float32)
    w_mean = 0.1 * jax.random.normal(k3, (chid, num_classes), jnp.float32)
    b_mean = jnp.zeros((1, num_classes), jnp.float32)
    w_var = 0.1 * jax.random.normal(k4, (chid, num_classes), jnp.float32)
    b_var = 0.01 * jax.random.normal(k5, (1, num_classes), jnp.float32)

    # Pack for the fused TPU kernels:
    #  - pad conv output channels to 128 lanes (zeros), bf16 for the MXU
    #  - concatenate mean/logvar head weights into one [chid_pad, 2*NC] bf16 matmul
    wc = jnp.zeros((9 * cin, chid_pad), jnp.float32).at[:, :chid].set(w_conv)
    wc = wc.astype(jnp.bfloat16)
    bc = jnp.zeros((1, chid_pad), jnp.float32).at[:, :chid].set(b_conv)
    wh = jnp.zeros((chid_pad, 2 * num_classes), jnp.float32)
    wh = wh.at[:chid, :num_classes].set(w_mean).at[:chid, num_classes:].set(w_var)
    wh = wh.astype(jnp.bfloat16)
    bh = jnp.concatenate([b_mean, b_var], axis=1)
    return {"wc": wc, "bc": bc, "wh": wh, "bh": bh}


if __name__ == "__main__":
    key = jax.random.PRNGKey(0)
    kx, kp = jax.random.split(key)

    N, CIN, H, W = 2, 4, 16, 16
    CHID, NC = 32, 16
    x = jax.random.normal(kx, (N, CIN, H, W), jnp.float32)
    params = init_params(kp, cin=CIN, chid=CHID, num_classes=NC)

    out = model_forward_aleatoric(x, params)
    jax.block_until_ready(out)
    mean, var = out["mean"], out["var"]

    # ---- pure-JAX reference (same packed/bf16 weights) ----------------------
    def ref_forward(x_nchw, p):
        xh = jnp.transpose(x_nchw, (0, 2, 3, 1)).astype(jnp.bfloat16)
        xpad = jnp.pad(xh, ((0, 0), (1, 1), (1, 1), (0, 0)))
        cols = [xpad[:, dh:dh + H, dw:dw + W, :]
                for dh in range(3) for dw in range(3)]
        pat = jnp.concatenate(cols, axis=3).reshape(N, H * W, 9 * CIN)
        feat = jnp.einsum("npk,kc->npc", pat, p["wc"],
                          preferred_element_type=jnp.float32) + p["bc"]
        feat = jnp.maximum(feat, 0.0)
        pooled = jnp.mean(feat, axis=1)
        head = jnp.dot(pooled.astype(jnp.bfloat16), p["wh"],
                       preferred_element_type=jnp.float32) + p["bh"]
        m, lv = head[:, :NC], head[:, NC:]
        v = jnp.exp(lv)
        return m, v / jnp.max(v)

    m_ref, v_ref = ref_forward(x, params)

    assert mean.shape == (N, NC) and var.shape == (N, NC)
    assert bool(jnp.allclose(mean, m_ref, atol=1e-2, rtol=1e-2))
    assert bool(jnp.allclose(var, v_ref, atol=1e-2, rtol=1e-2))
    assert bool(jnp.all(var > 0)) and abs(float(jnp.max(var)) - 1.0) < 1e-5
    print("KERNEL_OK")
</pallas_src>

<mosaic_0001>
module attributes {stable_mosaic.version = 11 : i64} {
  func.func @kernel(%arg0: i32, %arg1: memref<2048x36xbf16, #tpu.memory_space<vmem>>, %arg2: memref<36x128xbf16, #tpu.memory_space<vmem>>, %arg3: memref<1x128xf32, #tpu.memory_space<vmem>>, %arg4: memref<8x128xf32, #tpu.memory_space<vmem>>) attributes {dimension_semantics = [#tpu.dimension_semantics<parallel>], iteration_bounds = array<i64: 1>, scalar_prefetch = 0 : i64, scratch_operands = 0 : i64, tpu.core_type = #tpu.core_type<tc>, window_params = [{transform_indices = @transform_0, window_bounds = array<i64: 2048, 36>}, {pipeline_mode = #tpu.pipeline_mode<synchronous>, transform_indices = @transform_1, window_bounds = array<i64: 36, 128>}, {pipeline_mode = #tpu.pipeline_mode<synchronous>, transform_indices = @transform_2, window_bounds = array<i64: 1, 128>}, {transform_indices = @transform_3, window_bounds = array<i64: 8, 128>}]} {
    %c0 = arith.constant 0 : index
    %c0_0 = arith.constant 0 : index
    %0 = vector.load %arg1[%c0, %c0_0] : memref<2048x36xbf16, #tpu.memory_space<vmem>>, vector<2048x36xbf16>
    %c0_1 = arith.constant 0 : index
    %c0_2 = arith.constant 0 : index
    %1 = vector.load %arg2[%c0_1, %c0_2] : memref<36x128xbf16, #tpu.memory_space<vmem>>, vector<36x128xbf16>
    %cst = arith.constant dense<0.000000e+00> : vector<2048x128xf32>
    %2 = tpu.matmul %0, %1, %cst {dimension_numbers = #tpu.dot_dimension_numbers<[1], [0], [0], [1], [0, 0, 1, 1], [], []>} : vector<2048x36xbf16>, vector<36x128xbf16>, vector<2048x128xf32> -> vector<2048x128xf32>
    %c0_3 = arith.constant 0 : index
    %c0_4 = arith.constant 0 : index
    %3 = vector.load %arg3[%c0_3, %c0_4] : memref<1x128xf32, #tpu.memory_space<vmem>>, vector<1x128xf32>
    %4 = vector.broadcast %3 : vector<1x128xf32> to vector<2048x128xf32>
    %5 = arith.addf %2, %4 : vector<2048x128xf32>
    %cst_5 = arith.constant 0.000000e+00 : f32
    %6 = vector.broadcast %cst_5 : f32 to vector<2048x128xf32>
    %7 = arith.maximumf %5, %6 : vector<2048x128xf32>
    %8 = vector.shape_cast %7 : vector<2048x128xf32> to vector<8x256x128xf32>
    %cst_6 = arith.constant dense<0.000000e+00> : vector<8x128xf32>
    %9 = vector.multi_reduction <add>, %8, %cst_6 [1] : vector<8x256x128xf32> to vector<8x128xf32>
    %cst_7 = arith.constant 2.560000e+02 : f32
    %10 = vector.broadcast %cst_7 : f32 to vector<8x128xf32>
    %11 = arith.divf %9, %10 : vector<8x128xf32>
    %c0_8 = arith.constant 0 : index
    %c0_9 = arith.constant 0 : index
    %12 = vector.load %arg4[%c0_8, %c0_9] : memref<8x128xf32, #tpu.memory_space<vmem>>, vector<8x128xf32>
    tpu.vector_store %arg4[%c0_8, %c0_9], %11 {strides = array<i32>} : memref<8x128xf32, #tpu.memory_space<vmem>>, vector<8x128xf32>,
    return
  }
  func.func @transform_0(%arg0: i32) -> (i32, i32) {
    %c0_i32 = arith.constant 0 : i32
    %c0_i32_0 = arith.constant 0 : i32
    return %arg0, %c0_i32 : i32, i32
  }
  func.func @transform_1(%arg0: i32) -> (i32, i32) {
    %c0_i32 = arith.constant 0 : i32
    %c0_i32_0 = arith.constant 0 : i32
    %c0_i32_1 = arith.constant 0 : i32
    return %c0_i32, %c0_i32_0 : i32, i32
  }
  func.func @transform_2(%arg0: i32) -> (i32, i32) {
    %c0_i32 = arith.constant 0 : i32
    %c0_i32_0 = arith.constant 0 : i32
    %c0_i32_1 = arith.constant 0 : i32
    return %c0_i32, %c0_i32_0 : i32, i32
  }
  func.func @transform_3(%arg0: i32) -> (i32, i32) {
    %c0_i32 = arith.constant 0 : i32
    %c0_i32_0 = arith.constant 0 : i32
    return %arg0, %c0_i32 : i32, i32
  }
}

module attributes {stable_mosaic.version = 11 : i64} {
  func.func @kernel(%arg0: i32, %arg1: memref<8x128xf32, #tpu.memory_space<vmem>>, %arg2: memref<128x32xbf16, #tpu.memory_space<vmem>>, %arg3: memref<1x32xf32, #tpu.memory_space<vmem>>, %arg4: memref<8x32xf32, #tpu.memory_space<vmem>>) attributes {dimension_semantics = [#tpu.dimension_semantics<arbitrary>], iteration_bounds = array<i64: 1>, scalar_prefetch = 0 : i64, scratch_operands = 0 : i64, tpu.core_type = #tpu.core_type<tc>, window_params = [{pipeline_mode = #tpu.pipeline_mode<synchronous>, transform_indices = @transform_0, window_bounds = array<i64: 8, 128>}, {pipeline_mode = #tpu.pipeline_mode<synchronous>, transform_indices = @transform_1, window_bounds = array<i64: 128, 32>}, {pipeline_mode = #tpu.pipeline_mode<synchronous>, transform_indices = @transform_2, window_bounds = array<i64: 1, 32>}, {pipeline_mode = #tpu.pipeline_mode<synchronous>, transform_indices = @transform_3, window_bounds = array<i64: 8, 32>}]} {
    %c0 = arith.constant 0 : index
    %c0_0 = arith.constant 0 : index
    %0 = vector.load %arg1[%c0, %c0_0] : memref<8x128xf32, #tpu.memory_space<vmem>>, vector<8x128xf32>
    %1 = arith.truncf %0 : vector<8x128xf32> to vector<8x128xbf16>
    %c0_1 = arith.constant 0 : index
    %c0_2 = arith.constant 0 : index
    %2 = vector.load %arg2[%c0_1, %c0_2] : memref<128x32xbf16, #tpu.memory_space<vmem>>, vector<128x32xbf16>
    %cst = arith.constant dense<0.000000e+00> : vector<8x32xf32>
    %3 = tpu.matmul %1, %2, %cst {dimension_numbers = #tpu.dot_dimension_numbers<[1], [0], [0], [1], [0, 0, 1, 1], [], []>} : vector<8x128xbf16>, vector<128x32xbf16>, vector<8x32xf32> -> vector<8x32xf32>
    %c0_3 = arith.constant 0 : index
    %c0_4 = arith.constant 0 : index
    %4 = vector.load %arg3[%c0_3, %c0_4] : memref<1x32xf32, #tpu.memory_space<vmem>>, vector<1x32xf32>
    %5 = vector.broadcast %4 : vector<1x32xf32> to vector<8x32xf32>
    %6 = arith.addf %3, %5 : vector<8x32xf32>
    %7 = tpu.iota {dimensions = array<i32: 1>} : vector<8x32xi32>
    %8 = tpu.iota {dimensions = array<i32: 0>} : vector<8x32xi32>
    %c16_i32 = arith.constant 16 : i32
    %9 = vector.broadcast %c16_i32 : i32 to vector<8x32xi32>
    %10 = arith.cmpi sge, %7, %9 : vector<8x32xi32>
    %c2_i32 = arith.constant 2 : i32
    %11 = vector.broadcast %c2_i32 : i32 to vector<8x32xi32>
    %12 = arith.cmpi slt, %8, %11 : vector<8x32xi32>
    %13 = arith.andi %10, %12 : vector<8x32xi1>
    %cst_5 = arith.constant 0xFF800000 : f32
    %14 = vector.broadcast %cst_5 : f32 to vector<8x32xf32>
    %15 = arith.select %13, %6, %14 : vector<8x32xi1>, vector<8x32xf32>
    %16 = vector.shape_cast %15 : vector<8x32xf32> to vector<1x8x32xf32>
    %cst_6 = arith.constant dense<0xFF800000> : vector<1xf32>
    %17 = vector.multi_reduction <maximumf>, %16, %cst_6 [1, 2] : vector<1x8x32xf32> to vector<1xf32>
    %18 = vector.shape_cast %17 : vector<1xf32> to vector<1x1x1xf32>
    %19 = vector.extract %18[0, 0, 0] : f32 from vector<1x1x1xf32>
    %20 = vector.broadcast %19 : f32 to vector<8x32xf32>
    %21 = arith.subf %6, %20 : vector<8x32xf32>
    %22 = math.exp %21 : vector<8x32xf32>
    %23 = arith.select %10, %22, %6 : vector<8x32xi1>, vector<8x32xf32>
    %c0_7 = arith.constant 0 : index
    %c0_8 = arith.constant 0 : index
    %24 = vector.load %arg4[%c0_7, %c0_8] : memref<8x32xf32, #tpu.memory_space<vmem>>, vector<8x32xf32>
    tpu.vector_store %arg4[%c0_7, %c0_8], %23 {strides = array<i32>} : memref<8x32xf32, #tpu.memory_space<vmem>>, vector<8x32xf32>,
    return
  }
  func.func @transform_0(%arg0: i32) -> (i32, i32) {
    %c0_i32 = arith.constant 0 : i32
    %c0_i32_0 = arith.constant 0 : i32
    %c0_i32_1 = arith.constant 0 : i32
    return %c0_i32, %c0_i32_0 : i32, i32
  }
  func.func @transform_1(%arg0: i32) -> (i32, i32) {
    %c0_i32 = arith.constant 0 : i32
    %c0_i32_0 = arith.constant 0 : i32
    %c0_i32_1 = arith.constant 0 : i32
    return %c0_i32, %c0_i32_0 : i32, i32
  }
  func.func @transform_2(%arg0: i32) -> (i32, i32) {
    %c0_i32 = arith.constant 0 : i32
    %c0_i32_0 = arith.constant 0 : i32
    %c0_i32_1 = arith.constant 0 : i32
    return %c0_i32, %c0_i32_0 : i32, i32
  }
  func.func @transform_3(%arg0: i32) -> (i32, i32) {
    %c0_i32 = arith.constant 0 : i32
    %c0_i32_0 = arith.constant 0 : i32
    %c0_i32_1 = arith.constant 0 : i32
    return %c0_i32, %c0_i32_0 : i32, i32
  }
}

</mosaic_0001>

<llo_original>
// kernel: model_forward_aleatoric.3
$region0: #{model_forward_aleatoric.3}
  #allocation0 [shape = 'u32[]', space=smem, size = 0x4, offset = 0x4, fixed_abs, tag = 'smem constant byte address 0x4 - core index']
  #allocation1 [shape = 'u32[72,128]{1,0:T(1,128)}', space=vmem, size = 0x9000, scoped, tag = 'internal scratch']
  %s0 = inlined_call_operand.vmem [shape: f32[8,128], index: 0, kind: input, shape index: {}]
  %s1 = inlined_call_operand.vmem [shape: bf16[128,32], index: 1, kind: input, shape index: {}]
  %s2 = inlined_call_operand.vmem [shape: f32[1,32], index: 2, kind: input, shape index: {}]
  %s3 = inlined_call_operand.vmem [shape: f32[8,32], index: 3, kind: output, shape index: {}]
  %s4 = sld [smem:[#allocation0]]
  $region22: #{model_forward_aleatoric.3} parent=0
    _
  %s6 = ssub.s32 1, %s4
  %s7 = scalar_select 0, %s6, %s4
  // Predicated region
  $region2: #{model_forward_aleatoric.3} parent=0 // pred_check
    _
  $region3: #{model_forward_aleatoric.3} parent=0 // pred_check_branch
    %9 = sbr.rel (0) target = $region5
  $region4: #{model_forward_aleatoric.3} parent=0 // pred_region
    _
  $region5: #{model_forward_aleatoric.3} parent=0 // pred_fallthru
    _
  // Predicated region
  $region6: #{model_forward_aleatoric.3} parent=0 // pred_check
    _
  $region7: #{model_forward_aleatoric.3} parent=0 // pred_check_branch
    %11 = sbr.rel (0) target = $region9
  $region8: #{model_forward_aleatoric.3} parent=0 // pred_region
    _
  $region9: #{model_forward_aleatoric.3} parent=0 // pred_fallthru
    _
  // Predicated region
  $region10: #{model_forward_aleatoric.3} parent=0 // pred_check
    _
  $region11: #{model_forward_aleatoric.3} parent=0 // pred_check_branch
    %13 = sbr.rel (0) target = $region13
  $region12: #{model_forward_aleatoric.3} parent=0 // pred_region
    _
  $region13: #{model_forward_aleatoric.3} parent=0 // pred_fallthru
    _
  %v14 = vld [vmem:[%s0] sm:$0xff]
  %v15 = vpack.c.bf16 %v14, %v14
  %v16 = vld [vmem:[%s1] sm:$0xf]
  %v17 = vld [vmem:[%s1 + $0x4] sm:$0xf]
  %v18 = vld [vmem:[%s1 + $0x8] sm:$0xf]
  %v19 = vld [vmem:[%s1 + $0xc] sm:$0xf]
  %v20 = vld [vmem:[%s1 + $0x10] sm:$0xf]
  %v21 = vld [vmem:[%s1 + $0x14] sm:$0xf]
  %v22 = vld [vmem:[%s1 + $0x18] sm:$0xf]
  %v23 = vld [vmem:[%s1 + $0x1c] sm:$0xf]
  %v24 = vld [vmem:[%s1 + $0x20] sm:$0xf]
  %v25 = vld [vmem:[%s1 + $0x24] sm:$0xf]
  %v26 = vld [vmem:[%s1 + $0x28] sm:$0xf]
  %v27 = vld [vmem:[%s1 + $0x2c] sm:$0xf]
  %v28 = vld [vmem:[%s1 + $0x30] sm:$0xf]
  %v29 = vld [vmem:[%s1 + $0x34] sm:$0xf]
  %v30 = vld [vmem:[%s1 + $0x38] sm:$0xf]
  %v31 = vld [vmem:[%s1 + $0x3c] sm:$0xf]
  %v32 = vld [vmem:[%s2] sm:$0x1]
  %v34 = vperm.slane %v32, 0
  %v52 = vunpack.c.l.b16 %v16
  %v53 = vunpack.c.l.b16 %v17
  %v54 = vunpack.c.l.b16 %v18
  %v55 = vunpack.c.l.b16 %v19
  %v56 = vunpack.c.l.b16 %v20
  %v57 = vunpack.c.l.b16 %v21
  %v58 = vunpack.c.l.b16 %v22
  %v59 = vunpack.c.l.b16 %v23
  %v60 = vunpack.c.l.b16 %v24
  %v61 = vunpack.c.l.b16 %v25
  %v62 = vunpack.c.l.b16 %v26
  %v63 = vunpack.c.l.b16 %v27
  %v64 = vunpack.c.l.b16 %v28
  %v65 = vunpack.c.l.b16 %v29
  %v66 = vunpack.c.l.b16 %v30
  %v67 = vunpack.c.l.b16 %v31
  %v68 = vpack.c.b16 %v53, %v52
  %v69 = vpack.c.b16 %v55, %v54
  %v70 = vpack.c.b16 %v57, %v56
  %v71 = vpack.c.b16 %v59, %v58
  %v72 = vpack.c.b16 %v61, %v60
  %v73 = vpack.c.b16 %v63, %v62
  %v74 = vpack.c.b16 %v65, %v64
  %v75 = vpack.c.b16 %v67, %v66
  %84 = vmatpush.bf16.msra.mxu0 %v75
  %85 = vmatpush.bf16.msra.mxu0 %v74
  %86 = vmatpush.bf16.msra.mxu0 %v73
  %87 = vmatpush.bf16.msra.mxu0 %v72
  %88 = vmatpush.bf16.msra.mxu0 %v71
  %89 = vmatpush.bf16.msra.mxu0 %v70
  %90 = vmatpush.bf16.msra.mxu0 %v69
  %91 = vmatpush.bf16.msra.mxu0 %v68
  %92 = vmatmul.bf16.gmra.mxu0 %v15
  %v93 = vpop.f32.mrf.mxu0
  %v94 = vadd.f32 %v34, %v93
  %v95 = vpop.f32.mrf.mxu0
  %96 = vdwg.mxu0
  %v97 = vlaneseq
  %v98 = vand.u32 %v97, 127
  %v99 = vlaneseq
  %v100 = vshrl.u32 %v99, 7
  %vm101 = vcmp.ge.s32.totalorder %v98, 16
  %vm102 = vcmp.lt.s32.totalorder %v100, 2
  %vm103 = vmand %vm101, %vm102
  %v104 = vsel %vm103, %v94, -inf
  %vm105 = vcmask 261120
  %v106 = vsel %vm105, %v104, -inf
  %107 = vmax.xlane.f32.xlu0 %v106
  %v108 = vpop.xlane.xlu0 %107
  %v109 = vrot.slane %v108, 4
  %v110 = vmax.f32 %v108, %v109
  %v111 = vrot.slane %v110, 2
  %v112 = vmax.f32 %v110, %v111
  %v113 = vrot.slane %v112, 1
  %v114 = vmax.f32 %v112, %v113
  %s115 = vtos %v114
  %v116 = vstv %s115
  %v117 = vsub.f32 %v94, %v116
  %v118 = vmul.f32 %v117, 1.442695
  %v119 = vpow.pop %v118
  %v120 = vsel %vm101, %v119, %v94
  %121 = vst.msk [vmem:[%s3] sm:$0xff] %vm105, %v120
  // Predicated region
  $region14: #{model_forward_aleatoric.3} parent=0 // pred_check
    _
  $region15: #{model_forward_aleatoric.3} parent=0 // pred_check_branch
    %123 = sbr.rel (0) target = $region17
  $region16: #{model_forward_aleatoric.3} parent=0 // pred_region
    _
  $region17: #{model_forward_aleatoric.3} parent=0 // pred_fallthru
    _
  // Predicated region
  $region18: #{model_forward_aleatoric.3} parent=0 // pred_check
    _
  $region19: #{model_forward_aleatoric.3} parent=0 // pred_check_branch
    %125 = sbr.rel (0) target = $region21
  $region20: #{model_forward_aleatoric.3} parent=0 // pred_region
    _
  $region21: #{model_forward_aleatoric.3} parent=0 // pred_fallthru
    _

// kernel: model_forward_aleatoric.2
$region0: #{model_forward_aleatoric.2}
  #allocation0 [shape = 'u32[]', space=smem, size = 0x4, offset = 0x4, fixed_abs, tag = 'smem constant byte address 0x4 - core index']
  #allocation1 [shape = 'u32[72,128]{1,0:T(1,128)}', space=vmem, size = 0x9000, scoped, tag = 'internal scratch']
  %s0 = inlined_call_operand.vmem [shape: bf16[2048,36], index: 0, kind: input, shape index: {}]
  %s1 = inlined_call_operand.vmem [shape: bf16[36,128], index: 1, kind: input, shape index: {}]
  %s2 = inlined_call_operand.vmem [shape: f32[1,128], index: 2, kind: input, shape index: {}]
  %s3 = inlined_call_operand.vmem [shape: f32[8,128], index: 3, kind: output, shape index: {}]
  %s4 = sld [smem:[#allocation0]]
  $region22: #{model_forward_aleatoric.2} parent=0
    _
  %s6 = ssub.s32 1, %s4
  %s7 = scalar_select 0, %s6, %s4
  // Predicated region
  $region2: #{model_forward_aleatoric.2} parent=0 // pred_check
    _
  $region3: #{model_forward_aleatoric.2} parent=0 // pred_check_branch
    %9 = sbr.rel (0) target = $region5
  $region4: #{model_forward_aleatoric.2} parent=0 // pred_region
    _
  $region5: #{model_forward_aleatoric.2} parent=0 // pred_fallthru
    _
  // Predicated region
  $region6: #{model_forward_aleatoric.2} parent=0 // pred_check
    _
  $region7: #{model_forward_aleatoric.2} parent=0 // pred_check_branch
    %11 = sbr.rel (0) target = $region9
  $region8: #{model_forward_aleatoric.2} parent=0 // pred_region
    _
  $region9: #{model_forward_aleatoric.2} parent=0 // pred_fallthru
    _
  // Predicated region
  $region10: #{model_forward_aleatoric.2} parent=0 // pred_check
    _
  $region11: #{model_forward_aleatoric.2} parent=0 // pred_check_branch
    %13 = sbr.rel (0) target = $region13
  $region12: #{model_forward_aleatoric.2} parent=0 // pred_region
    _
  $region13: #{model_forward_aleatoric.2} parent=0 // pred_fallthru
    _
  %v15 = vld [vmem:[%s0] sm:$0xf]
  %v16 = vld [vmem:[%s0 + $0x4] sm:$0xf]
  %v17 = vld [vmem:[%s0 + $0x8] sm:$0xf]
  %v18 = vld [vmem:[%s0 + $0xc] sm:$0xf]
  %v19 = vld [vmem:[%s0 + $0x10] sm:$0xf]
  %v20 = vld [vmem:[%s0 + $0x14] sm:$0xf]
  %v21 = vld [vmem:[%s0 + $0x18] sm:$0xf]
  %v22 = vld [vmem:[%s0 + $0x1c] sm:$0xf]
  %v23 = vld [vmem:[%s0 + $0x20] sm:$0xf]
  %v24 = vld [vmem:[%s0 + $0x24] sm:$0xf]
  %v25 = vld [vmem:[%s0 + $0x28] sm:$0xf]
  %v26 = vld [vmem:[%s0 + $0x2c] sm:$0xf]
  %v27 = vld [vmem:[%s0 + $0x30] sm:$0xf]
  %v28 = vld [vmem:[%s0 + $0x34] sm:$0xf]
  %v29 = vld [vmem:[%s0 + $0x38] sm:$0xf]
  %v30 = vld [vmem:[%s0 + $0x3c] sm:$0xf]
  %v31 = vld [vmem:[%s0 + $0x40] sm:$0xf]
  %v32 = vld [vmem:[%s0 + $0x44] sm:$0xf]
  %v33 = vld [vmem:[%s0 + $0x48] sm:$0xf]
  %v34 = vld [vmem:[%s0 + $0x4c] sm:$0xf]
  %v35 = vld [vmem:[%s0 + $0x50] sm:$0xf]
  %v36 = vld [vmem:[%s0 + $0x54] sm:$0xf]
  %v37 = vld [vmem:[%s0 + $0x58] sm:$0xf]
  %v38 = vld [vmem:[%s0 + $0x5c] sm:$0xf]
  %v39 = vld [vmem:[%s0 + $0x60] sm:$0xf]
  %v40 = vld [vmem:[%s0 + $0x64] sm:$0xf]
  %v41 = vld [vmem:[%s0 + $0x68] sm:$0xf]
  %v42 = vld [vmem:[%s0 + $0x6c] sm:$0xf]
  %v43 = vld [vmem:[%s0 + $0x70] sm:$0xf]
  %v44 = vld [vmem:[%s0 + $0x74] sm:$0xf]
  %v45 = vld [vmem:[%s0 + $0x78] sm:$0xf]
  %v46 = vld [vmem:[%s0 + $0x7c] sm:$0xf]
  %v47 = vld [vmem:[%s0 + $0x80] sm:$0xf]
  %v48 = vld [vmem:[%s0 + $0x84] sm:$0xf]
  %v49 = vld [vmem:[%s0 + $0x88] sm:$0xf]
  %v50 = vld [vmem:[%s0 + $0x8c] sm:$0xf]
  %v51 = vld [vmem:[%s0 + $0x90] sm:$0xf]
  %v52 = vld [vmem:[%s0 + $0x94] sm:$0xf]
  %v53 = vld [vmem:[%s0 + $0x98] sm:$0xf]
  %v54 = vld [vmem:[%s0 + $0x9c] sm:$0xf]
  %v55 = vld [vmem:[%s0 + $0xa0] sm:$0xf]
  %v56 = vld [vmem:[%s0 + $0xa4] sm:$0xf]
  %v57 = vld [vmem:[%s0 + $0xa8] sm:$0xf]
  %v58 = vld [vmem:[%s0 + $0xac] sm:$0xf]
  %v59 = vld [vmem:[%s0 + $0xb0] sm:$0xf]
  %v60 = vld [vmem:[%s0 + $0xb4] sm:$0xf]
  %v61 = vld [vmem:[%s0 + $0xb8] sm:$0xf]
  %v62 = vld [vmem:[%s0 + $0xbc] sm:$0xf]
  %v63 = vld [vmem:[%s0 + $0xc0] sm:$0xf]
  %v64 = vld [vmem:[%s0 + $0xc4] sm:$0xf]
  %v65 = vld [vmem:[%s0 + $0xc8] sm:$0xf]
  %v66 = vld [vmem:[%s0 + $0xcc] sm:$0xf]
  %v67 = vld [vmem:[%s0 + $0xd0] sm:$0xf]
  %v68 = vld [vmem:[%s0 + $0xd4] sm:$0xf]
  %v69 = vld [vmem:[%s0 + $0xd8] sm:$0xf]
  %v70 = vld [vmem:[%s0 + $0xdc] sm:$0xf]
  %v71 = vld [vmem:[%s0 + $0xe0] sm:$0xf]
  %v72 = vld [vmem:[%s0 + $0xe4] sm:$0xf]
  %v73 = vld [vmem:[%s0 + $0xe8] sm:$0xf]
  %v74 = vld [vmem:[%s0 + $0xec] sm:$0xf]
  %v75 = vld [vmem:[%s0 + $0xf0] sm:$0xf]
  %v76 = vld [vmem:[%s0 + $0xf4] sm:$0xf]
  %v77 = vld [vmem:[%s0 + $0xf8] sm:$0xf]
  %v78 = vld [vmem:[%s0 + $0xfc] sm:$0xf]
  %v79 = vld [vmem:[%s0 + $0x100] sm:$0xf]
  %v80 = vld [vmem:[%s0 + $0x104] sm:$0xf]
  %v81 = vld [vmem:[%s0 + $0x108] sm:$0xf]
  %v82 = vld [vmem:[%s0 + $0x10c] sm:$0xf]
  %v83 = vld [vmem:[%s0 + $0x110] sm:$0xf]
  %v84 = vld [vmem:[%s0 + $0x114] sm:$0xf]
  %v85 = vld [vmem:[%s0 + $0x118] sm:$0xf]
  %v86 = vld [vmem:[%s0 + $0x11c] sm:$0xf]
  %v87 = vld [vmem:[%s0 + $0x120] sm:$0xf]
  %v88 = vld [vmem:[%s0 + $0x124] sm:$0xf]
  %v89 = vld [vmem:[%s0 + $0x128] sm:$0xf]
  %v90 = vld [vmem:[%s0 + $0x12c] sm:$0xf]
  %v91 = vld [vmem:[%s0 + $0x130] sm:$0xf]
  %v92 = vld [vmem:[%s0 + $0x134] sm:$0xf]
  %v93 = vld [vmem:[%s0 + $0x138] sm:$0xf]
  %v94 = vld [vmem:[%s0 + $0x13c] sm:$0xf]
  %v95 = vld [vmem:[%s0 + $0x140] sm:$0xf]
  %v96 = vld [vmem:[%s0 + $0x144] sm:$0xf]
  %v97 = vld [vmem:[%s0 + $0x148] sm:$0xf]
  %v98 = vld [vmem:[%s0 + $0x14c] sm:$0xf]
  %v99 = vld [vmem:[%s0 + $0x150] sm:$0xf]
  %v100 = vld [vmem:[%s0 + $0x154] sm:$0xf]
  %v101 = vld [vmem:[%s0 + $0x158] sm:$0xf]
  %v102 = vld [vmem:[%s0 + $0x15c] sm:$0xf]
  %v103 = vld [vmem:[%s0 + $0x160] sm:$0xf]
  %v104 = vld [vmem:[%s0 + $0x164] sm:$0xf]
  %v105 = vld [vmem:[%s0 + $0x168] sm:$0xf]
  %v106 = vld [vmem:[%s0 + $0x16c] sm:$0xf]
  %v107 = vld [vmem:[%s0 + $0x170] sm:$0xf]
  %v108 = vld [vmem:[%s0 + $0x174] sm:$0xf]
  %v109 = vld [vmem:[%s0 + $0x178] sm:$0xf]
  %v110 = vld [vmem:[%s0 + $0x17c] sm:$0xf]
  %v111 = vld [vmem:[%s0 + $0x180] sm:$0xf]
  %v112 = vld [vmem:[%s0 + $0x184] sm:$0xf]
  %v113 = vld [vmem:[%s0 + $0x188] sm:$0xf]
  %v114 = vld [vmem:[%s0 + $0x18c] sm:$0xf]
  %v115 = vld [vmem:[%s0 + $0x190] sm:$0xf]
  %v116 = vld [vmem:[%s0 + $0x194] sm:$0xf]
  %v117 = vld [vmem:[%s0 + $0x198] sm:$0xf]
  %v118 = vld [vmem:[%s0 + $0x19c] sm:$0xf]
  %v119 = vld [vmem:[%s0 + $0x1a0] sm:$0xf]
  %v120 = vld [vmem:[%s0 + $0x1a4] sm:$0xf]
  %v121 = vld [vmem:[%s0 + $0x1a8] sm:$0xf]
  %v122 = vld [vmem:[%s0 + $0x1ac] sm:$0xf]
  %v123 = vld [vmem:[%s0 + $0x1b0] sm:$0xf]
  %v124 = vld [vmem:[%s0 + $0x1b4] sm:$0xf]
  %v125 = vld [vmem:[%s0 + $0x1b8] sm:$0xf]
  %v126 = vld [vmem:[%s0 + $0x1bc] sm:$0xf]
  %v127 = vld [vmem:[%s0 + $0x1c0] sm:$0xf]
  %v128 = vld [vmem:[%s0 + $0x1c4] sm:$0xf]
  %v129 = vld [vmem:[%s0 + $0x1c8] sm:$0xf]
  %v130 = vld [vmem:[%s0 + $0x1cc] sm:$0xf]
  %v131 = vld [vmem:[%s0 + $0x1d0] sm:$0xf]
  %v132 = vld [vmem:[%s0 + $0x1d4] sm:$0xf]
  %v133 = vld [vmem:[%s0 + $0x1d8] sm:$0xf]
  %v134 = vld [vmem:[%s0 + $0x1dc] sm:$0xf]
  %v135 = vld [vmem:[%s0 + $0x1e0] sm:$0xf]
  %v136 = vld [vmem:[%s0 + $0x1e4] sm:$0xf]
  %v137 = vld [vmem:[%s0 + $0x1e8] sm:$0xf]
  %v138 = vld [vmem:[%s0 + $0x1ec] sm:$0xf]
  %v139 = vld [vmem:[%s0 + $0x1f0] sm:$0xf]
  %v140 = vld [vmem:[%s0 + $0x1f4] sm:$0xf]
  %v141 = vld [vmem:[%s0 + $0x1f8] sm:$0xf]
  %v142 = vld [vmem:[%s0 + $0x1fc] sm:$0xf]
  %v143 = vld [vmem:[%s0 + $0x200] sm:$0xf]
  %v144 = vld [vmem:[%s0 + $0x204] sm:$0xf]
  %v145 = vld [vmem:[%s0 + $0x208] sm:$0xf]
  %v146 = vld [vmem:[%s0 + $0x20c] sm:$0xf]
  %v147 = vld [vmem:[%s0 + $0x210] sm:$0xf]
  %v148 = vld [vmem:[%s0 + $0x214] sm:$0xf]
  %v149 = vld [vmem:[%s0 + $0x218] sm:$0xf]
  %v150 = vld [vmem:[%s0 + $0x21c] sm:$0xf]
  %v151 = vld [vmem:[%s0 + $0x220] sm:$0xf]
  %v152 = vld [vmem:[%s0 + $0x224] sm:$0xf]
  %v153 = vld [vmem:[%s0 + $0x228] sm:$0xf]
  %v154 = vld [vmem:[%s0 + $0x22c] sm:$0xf]
  %v155 = vld [vmem:[%s0 + $0x230] sm:$0xf]
  %v156 = vld [vmem:[%s0 + $0x234] sm:$0xf]
  %v157 = vld [vmem:[%s0 + $0x238] sm:$0xf]
  %v158 = vld [vmem:[%s0 + $0x23c] sm:$0xf]
  %v159 = vld [vmem:[%s0 + $0x240] sm:$0xf]
  %v160 = vld [vmem:[%s0 + $0x244] sm:$0xf]
  %v161 = vld [vmem:[%s0 + $0x248] sm:$0xf]
  %v162 = vld [vmem:[%s0 + $0x24c] sm:$0xf]
  %v163 = vld [vmem:[%s0 + $0x250] sm:$0xf]
  %v164 = vld [vmem:[%s0 + $0x254] sm:$0xf]
  %v165 = vld [vmem:[%s0 + $0x258] sm:$0xf]
  %v166 = vld [vmem:[%s0 + $0x25c] sm:$0xf]
  %v167 = vld [vmem:[%s0 + $0x260] sm:$0xf]
  %v168 = vld [vmem:[%s0 + $0x264] sm:$0xf]
  %v169 = vld [vmem:[%s0 + $0x268] sm:$0xf]
  %v170 = vld [vmem:[%s0 + $0x26c] sm:$0xf]
  %v171 = vld [vmem:[%s0 + $0x270] sm:$0xf]
  %v172 = vld [vmem:[%s0 + $0x274] sm:$0xf]
  %v173 = vld [vmem:[%s0 + $0x278] sm:$0xf]
  %v174 = vld [vmem:[%s0 + $0x27c] sm:$0xf]
  %v175 = vld [vmem:[%s0 + $0x280] sm:$0xf]
  %v176 = vld [vmem:[%s0 + $0x284] sm:$0xf]
  %v177 = vld [vmem:[%s0 + $0x288] sm:$0xf]
  %v178 = vld [vmem:[%s0 + $0x28c] sm:$0xf]
  %v179 = vld [vmem:[%s0 + $0x290] sm:$0xf]
  %v180 = vld [vmem:[%s0 + $0x294] sm:$0xf]
  %v181 = vld [vmem:[%s0 + $0x298] sm:$0xf]
  %v182 = vld [vmem:[%s0 + $0x29c] sm:$0xf]
  %v183 = vld [vmem:[%s0 + $0x2a0] sm:$0xf]
  %v184 = vld [vmem:[%s0 + $0x2a4] sm:$0xf]
  %v185 = vld [vmem:[%s0 + $0x2a8] sm:$0xf]
  %v186 = vld [vmem:[%s0 + $0x2ac] sm:$0xf]
  %v187 = vld [vmem:[%s0 + $0x2b0] sm:$0xf]
  %v188 = vld [vmem:[%s0 + $0x2b4] sm:$0xf]
  %v189 = vld [vmem:[%s0 + $0x2b8] sm:$0xf]
  %v190 = vld [vmem:[%s0 + $0x2bc] sm:$0xf]
  %v191 = vld [vmem:[%s0 + $0x2c0] sm:$0xf]
  %v192 = vld [vmem:[%s0 + $0x2c4] sm:$0xf]
  %v193 = vld [vmem:[%s0 + $0x2c8] sm:$0xf]
  %v194 = vld [vmem:[%s0 + $0x2cc] sm:$0xf]
  %v195 = vld [vmem:[%s0 + $0x2d0] sm:$0xf]
  %v196 = vld [vmem:[%s0 + $0x2d4] sm:$0xf]
  %v197 = vld [vmem:[%s0 + $0x2d8] sm:$0xf]
  %v198 = vld [vmem:[%s0 + $0x2dc] sm:$0xf]
  %v199 = vld [vmem:[%s0 + $0x2e0] sm:$0xf]
  %v200 = vld [vmem:[%s0 + $0x2e4] sm:$0xf]
  %v201 = vld [vmem:[%s0 + $0x2e8] sm:$0xf]
  %v202 = vld [vmem:[%s0 + $0x2ec] sm:$0xf]
  %v203 = vld [vmem:[%s0 + $0x2f0] sm:$0xf]
  %v204 = vld [vmem:[%s0 + $0x2f4] sm:$0xf]
  %v205 = vld [vmem:[%s0 + $0x2f8] sm:$0xf]
  %v206 = vld [vmem:[%s0 + $0x2fc] sm:$0xf]
  %v207 = vld [vmem:[%s0 + $0x300] sm:$0xf]
  %v208 = vld [vmem:[%s0 + $0x304] sm:$0xf]
  %v209 = vld [vmem:[%s0 + $0x308] sm:$0xf]
  %v210 = vld [vmem:[%s0 + $0x30c] sm:$0xf]
  %v211 = vld [vmem:[%s0 + $0x310] sm:$0xf]
  %v212 = vld [vmem:[%s0 + $0x314] sm:$0xf]
  %v213 = vld [vmem:[%s0 + $0x318] sm:$0xf]
  %v214 = vld [vmem:[%s0 + $0x31c] sm:$0xf]
  %v215 = vld [vmem:[%s0 + $0x320] sm:$0xf]
  %v216 = vld [vmem:[%s0 + $0x324] sm:$0xf]
  %v217 = vld [vmem:[%s0 + $0x328] sm:$0xf]
  %v218 = vld [vmem:[%s0 + $0x32c] sm:$0xf]
  %v219 = vld [vmem:[%s0 + $0x330] sm:$0xf]
  %v220 = vld [vmem:[%s0 + $0x334] sm:$0xf]
  %v221 = vld [vmem:[%s0 + $0x338] sm:$0xf]
  %v222 = vld [vmem:[%s0 + $0x33c] sm:$0xf]
  %v223 = vld [vmem:[%s0 + $0x340] sm:$0xf]
  %v224 = vld [vmem:[%s0 + $0x344] sm:$0xf]
  %v225 = vld [vmem:[%s0 + $0x348] sm:$0xf]
  %v226 = vld [vmem:[%s0 + $0x34c] sm:$0xf]
  %v227 = vld [vmem:[%s0 + $0x350] sm:$0xf]
  %v228 = vld [vmem:[%s0 + $0x354] sm:$0xf]
  %v229 = vld [vmem:[%s0 + $0x358] sm:$0xf]
  %v230 = vld [vmem:[%s0 + $0x35c] sm:$0xf]
  %v231 = vld [vmem:[%s0 + $0x360] sm:$0xf]
  %v232 = vld [vmem:[%s0 + $0x364] sm:$0xf]
  %v233 = vld [vmem:[%s0 + $0x368] sm:$0xf]
  %v234 = vld [vmem:[%s0 + $0x36c] sm:$0xf]
  %v235 = vld [vmem:[%s0 + $0x370] sm:$0xf]
  %v236 = vld [vmem:[%s0 + $0x374] sm:$0xf]
  %v237 = vld [vmem:[%s0 + $0x378] sm:$0xf]
  %v238 = vld [vmem:[%s0 + $0x37c] sm:$0xf]
  %v239 = vld [vmem:[%s0 + $0x380] sm:$0xf]
  %v240 = vld [vmem:[%s0 + $0x384] sm:$0xf]
  %v241 = vld [vmem:[%s0 + $0x388] sm:$0xf]
  %v242 = vld [vmem:[%s0 + $0x38c] sm:$0xf]
  %v243 = vld [vmem:[%s0 + $0x390] sm:$0xf]
  %v244 = vld [vmem:[%s0 + $0x394] sm:$0xf]
  %v245 = vld [vmem:[%s0 + $0x398] sm:$0xf]
  %v246 = vld [vmem:[%s0 + $0x39c] sm:$0xf]
  %v247 = vld [vmem:[%s0 + $0x3a0] sm:$0xf]
  %v248 = vld [vmem:[%s0 + $0x3a4] sm:$0xf]
  %v249 = vld [vmem:[%s0 + $0x3a8] sm:$0xf]
  %v250 = vld [vmem:[%s0 + $0x3ac] sm:$0xf]
  %v251 = vld [vmem:[%s0 + $0x3b0] sm:$0xf]
  %v252 = vld [vmem:[%s0 + $0x3b4] sm:$0xf]
  %v253 = vld [vmem:[%s0 + $0x3b8] sm:$0xf]
  %v254 = vld [vmem:[%s0 + $0x3bc] sm:$0xf]
  %v255 = vld [vmem:[%s0 + $0x3c0] sm:$0xf]
  %v256 = vld [vmem:[%s0 + $0x3c4] sm:$0xf]
  %v257 = vld [vmem:[%s0 + $0x3c8] sm:$0xf]
  %v258 = vld [vmem:[%s0 + $0x3cc] sm:$0xf]
  %v259 = vld [vmem:[%s0 + $0x3d0] sm:$0xf]
  %v260 = vld [vmem:[%s0 + $0x3d4] sm:$0xf]
  %v261 = vld [vmem:[%s0 + $0x3d8] sm:$0xf]
  %v262 = vld [vmem:[%s0 + $0x3dc] sm:$0xf]
  %v263 = vld [vmem:[%s0 + $0x3e0] sm:$0xf]
  %v264 = vld [vmem:[%s0 + $0x3e4] sm:$0xf]
  %v265 = vld [vmem:[%s0 + $0x3e8] sm:$0xf]
  %v266 = vld [vmem:[%s0 + $0x3ec] sm:$0xf]
  %v267 = vld [vmem:[%s0 + $0x3f0] sm:$0xf]
  %v268 = vld [vmem:[%s0 + $0x3f4] sm:$0xf]
  %v269 = vld [vmem:[%s0 + $0x3f8] sm:$0xf]
  %v270 = vld [vmem:[%s0 + $0x3fc] sm:$0xf]
  %v271 = vld [vmem:[%s1] sm:$0xf]
  %v272 = vld [vmem:[%s1 + $0x4] sm:$0xf]
  %v273 = vld [vmem:[%s1 + $0x8] sm:$0xf]
  %v274 = vld [vmem:[%s1 + $0xc] sm:$0xf]
  %v275 = vld [vmem:[%s1 + $0x10] sm:$0x3]
  %v276 = vld [vmem:[%s2] sm:$0x1]
  %v278 = vperm.slane %v276, 0
  %v536 = vunpack.c.l.b16 %v15
  %v537 = vunpack.c.l.b16 %v16
  %v538 = vunpack.c.l.b16 %v17
  %v539 = vunpack.c.l.b16 %v18
  %v540 = vunpack.c.l.b16 %v19
  %v541 = vunpack.c.l.b16 %v20
  %v542 = vunpack.c.l.b16 %v21
  %v543 = vunpack.c.l.b16 %v22
  %v544 = vunpack.c.l.b16 %v23
  %v545 = vunpack.c.l.b16 %v24
  %v546 = vunpack.c.l.b16 %v25
  %v547 = vunpack.c.l.b16 %v26
  %v548 = vunpack.c.l.b16 %v27
  %v549 = vunpack.c.l.b16 %v28
  %v550 = vunpack.c.l.b16 %v29
  %v551 = vunpack.c.l.b16 %v30
  %v552 = vunpack.c.l.b16 %v31
  %v553 = vunpack.c.l.b16 %v32
  %v554 = vunpack.c.l.b16 %v33
  %v555 = vunpack.c.l.b16 %v34
  %v556 = vunpack.c.l.b16 %v35
  %v557 = vunpack.c.l.b16 %v36
  %v558 = vunpack.c.l.b16 %v37
  %v559 = vunpack.c.l.b16 %v38
  %v560 = vunpack.c.l.b16 %v39
  %v561 = vunpack.c.l.b16 %v40
  %v562 = vunpack.c.l.b16 %v41
  %v563 = vunpack.c.l.b16 %v42
  %v564 = vunpack.c.l.b16 %v43
  %v565 = vunpack.c.l.b16 %v44
  %v566 = vunpack.c.l.b16 %v45
  %v567 = vunpack.c.l.b16 %v46
  %v568 = vunpack.c.l.b16 %v47
  %v569 = vunpack.c.l.b16 %v48
  %v570 = vunpack.c.l.b16 %v49
  %v571 = vunpack.c.l.b16 %v50
  %v572 = vunpack.c.l.b16 %v51
  %v573 = vunpack.c.l.b16 %v52
  %v574 = vunpack.c.l.b16 %v53
  %v575 = vunpack.c.l.b16 %v54
  %v576 = vunpack.c.l.b16 %v55
  %v577 = vunpack.c.l.b16 %v56
  %v578 = vunpack.c.l.b16 %v57
  %v579 = vunpack.c.l.b16 %v58
  %v580 = vunpack.c.l.b16 %v59
  %v581 = vunpack.c.l.b16 %v60
  %v582 = vunpack.c.l.b16 %v61
  %v583 = vunpack.c.l.b16 %v62
  %v584 = vunpack.c.l.b16 %v63
  %v585 = vunpack.c.l.b16 %v64
  %v586 = vunpack.c.l.b16 %v65
  %v587 = vunpack.c.l.b16 %v66
  %v588 = vunpack.c.l.b16 %v67
  %v589 = vunpack.c.l.b16 %v68
  %v590 = vunpack.c.l.b16 %v69
  %v591 = vunpack.c.l.b16 %v70
  %v592 = vunpack.c.l.b16 %v71
  %v593 = vunpack.c.l.b16 %v72
  %v594 = vunpack.c.l.b16 %v73
  %v595 = vunpack.c.l.b16 %v74
  %v596 = vunpack.c.l.b16 %v75
  %v597 = vunpack.c.l.b16 %v76
  %v598 = vunpack.c.l.b16 %v77
  %v599 = vunpack.c.l.b16 %v78
  %v600 = vunpack.c.l.b16 %v79
  %v601 = vunpack.c.l.b16 %v80
  %v602 = vunpack.c.l.b16 %v81
  %v603 = vunpack.c.l.b16 %v82
  %v604 = vunpack.c.l.b16 %v83
  %v605 = vunpack.c.l.b16 %v84
  %v606 = vunpack.c.l.b16 %v85
  %v607 = vunpack.c.l.b16 %v86
  %v608 = vunpack.c.l.b16 %v87
  %v609 = vunpack.c.l.b16 %v88
  %v610 = vunpack.c.l.b16 %v89
  %v611 = vunpack.c.l.b16 %v90
  %v612 = vunpack.c.l.b16 %v91
  %v613 = vunpack.c.l.b16 %v92
  %v614 = vunpack.c.l.b16 %v93
  %v615 = vunpack.c.l.b16 %v94
  %v616 = vunpack.c.l.b16 %v95
  %v617 = vunpack.c.l.b16 %v96
  %v618 = vunpack.c.l.b16 %v97
  %v619 = vunpack.c.l.b16 %v98
  %v620 = vunpack.c.l.b16 %v99
  %v621 = vunpack.c.l.b16 %v100
  %v622 = vunpack.c.l.b16 %v101
  %v623 = vunpack.c.l.b16 %v102
  %v624 = vunpack.c.l.b16 %v103
  %v625 = vunpack.c.l.b16 %v104
  %v626 = vunpack.c.l.b16 %v105
  %v627 = vunpack.c.l.b16 %v106
  %v628 = vunpack.c.l.b16 %v107
  %v629 = vunpack.c.l.b16 %v108
  %v630 = vunpack.c.l.b16 %v109
  %v631 = vunpack.c.l.b16 %v110
  %v632 = vunpack.c.l.b16 %v111
  %v633 = vunpack.c.l.b16 %v112
  %v634 = vunpack.c.l.b16 %v113
  %v635 = vunpack.c.l.b16 %v114
  %v636 = vunpack.c.l.b16 %v115
  %v637 = vunpack.c.l.b16 %v116
  %v638 = vunpack.c.l.b16 %v117
  %v639 = vunpack.c.l.b16 %v118
  %v640 = vunpack.c.l.b16 %v119
  %v641 = vunpack.c.l.b16 %v120
  %v642 = vunpack.c.l.b16 %v121
  %v643 = vunpack.c.l.b16 %v122
  %v644 = vunpack.c.l.b16 %v123
  %v645 = vunpack.c.l.b16 %v124
  %v646 = vunpack.c.l.b16 %v125
  %v647 = vunpack.c.l.b16 %v126
  %v648 = vunpack.c.l.b16 %v127
  %v649 = vunpack.c.l.b16 %v128
  %v650 = vunpack.c.l.b16 %v129
  %v651 = vunpack.c.l.b16 %v130
  %v652 = vunpack.c.l.b16 %v131
  %v653 = vunpack.c.l.b16 %v132
  %v654 = vunpack.c.l.b16 %v133
  %v655 = vunpack.c.l.b16 %v134
  %v656 = vunpack.c.l.b16 %v135
  %v657 = vunpack.c.l.b16 %v136
  %v658 = vunpack.c.l.b16 %v137
  %v659 = vunpack.c.l.b16 %v138
  %v660 = vunpack.c.l.b16 %v139
  %v661 = vunpack.c.l.b16 %v140
  %v662 = vunpack.c.l.b16 %v141
  %v663 = vunpack.c.l.b16 %v142
  %v664 = vunpack.c.l.b16 %v143
  %v665 = vunpack.c.l.b16 %v144
  %v666 = vunpack.c.l.b16 %v145
  %v667 = vunpack.c.l.b16 %v146
  %v668 = vunpack.c.l.b16 %v147
  %v669 = vunpack.c.l.b16 %v148
  %v670 = vunpack.c.l.b16 %v149
  %v671 = vunpack.c.l.b16 %v150
  %v672 = vunpack.c.l.b16 %v151
  %v673 = vunpack.c.l.b16 %v152
  %v674 = vunpack.c.l.b16 %v153
  %v675 = vunpack.c.l.b16 %v154
  %v676 = vunpack.c.l.b16 %v155
  %v677 = vunpack.c.l.b16 %v156
  %v678 = vunpack.c.l.b16 %v157
  %v679 = vunpack.c.l.b16 %v158
  %v680 = vunpack.c.l.b16 %v159
  %v681 = vunpack.c.l.b16 %v160
  %v682 = vunpack.c.l.b16 %v161
  %v683 = vunpack.c.l.b16 %v162
  %v684 = vunpack.c.l.b16 %v163
  %v685 = vunpack.c.l.b16 %v164
  %v686 = vunpack.c.l.b16 %v165
  %v687 = vunpack.c.l.b16 %v166
  %v688 = vunpack.c.l.b16 %v167
  %v689 = vunpack.c.l.b16 %v168
  %v690 = vunpack.c.l.b16 %v169
  %v691 = vunpack.c.l.b16 %v170
  %v692 = vunpack.c.l.b16 %v171
  %v693 = vunpack.c.l.b16 %v172
  %v694 = vunpack.c.l.b16 %v173
  %v695 = vunpack.c.l.b16 %v174
  %v696 = vunpack.c.l.b16 %v175
  %v697 = vunpack.c.l.b16 %v176
  %v698 = vunpack.c.l.b16 %v177
  %v699 = vunpack.c.l.b16 %v178
  %v700 = vunpack.c.l.b16 %v179
  %v701 = vunpack.c.l.b16 %v180
  %v702 = vunpack.c.l.b16 %v181
  %v703 = vunpack.c.l.b16 %v182
  %v704 = vunpack.c.l.b16 %v183
  %v705 = vunpack.c.l.b16 %v184
  %v706 = vunpack.c.l.b16 %v185
  %v707 = vunpack.c.l.b16 %v186
  %v708 = vunpack.c.l.b16 %v187
  %v709 = vunpack.c.l.b16 %v188
  %v710 = vunpack.c.l.b16 %v189
  %v711 = vunpack.c.l.b16 %v190
  %v712 = vunpack.c.l.b16 %v191
  %v713 = vunpack.c.l.b16 %v192
  %v714 = vunpack.c.l.b16 %v193
  %v715 = vunpack.c.l.b16 %v194
  %v716 = vunpack.c.l.b16 %v195
  %v717 = vunpack.c.l.b16 %v196
  %v718 = vunpack.c.l.b16 %v197
  %v719 = vunpack.c.l.b16 %v198
  %v720 = vunpack.c.l.b16 %v199
  %v721 = vunpack.c.l.b16 %v200
  %v722 = vunpack.c.l.b16 %v201
  %v723 = vunpack.c.l.b16 %v202
  %v724 = vunpack.c.l.b16 %v203
  %v725 = vunpack.c.l.b16 %v204
  %v726 = vunpack.c.l.b16 %v205
  %v727 = vunpack.c.l.b16 %v206
  %v728 = vunpack.c.l.b16 %v207
  %v729 = vunpack.c.l.b16 %v208
  %v730 = vunpack.c.l.b16 %v209
  %v731 = vunpack.c.l.b16 %v210
  %v732 = vunpack.c.l.b16 %v211
  %v733 = vunpack.c.l.b16 %v212
  %v734 = vunpack.c.l.b16 %v213
  %v735 = vunpack.c.l.b16 %v214
  %v736 = vunpack.c.l.b16 %v215
  %v737 = vunpack.c.l.b16 %v216
  %v738 = vunpack.c.l.b16 %v217
  %v739 = vunpack.c.l.b16 %v218
  %v740 = vunpack.c.l.b16 %v219
  %v741 = vunpack.c.l.b16 %v220
  %v742 = vunpack.c.l.b16 %v221
  %v743 = vunpack.c.l.b16 %v222
  %v744 = vunpack.c.l.b16 %v223
  %v745 = vunpack.c.l.b16 %v224
  %v746 = vunpack.c.l.b16 %v225
  %v747 = vunpack.c.l.b16 %v226
  %v748 = vunpack.c.l.b16 %v227
  %v749 = vunpack.c.l.b16 %v228
  %v750 = vunpack.c.l.b16 %v229
  %v751 = vunpack.c.l.b16 %v230
  %v752 = vunpack.c.l.b16 %v231
  %v753 = vunpack.c.l.b16 %v232
  %v754 = vunpack.c.l.b16 %v233
  %v755 = vunpack.c.l.b16 %v234
  %v756 = vunpack.c.l.b16 %v235
  %v757 = vunpack.c.l.b16 %v236
  %v758 = vunpack.c.l.b16 %v237
  %v759 = vunpack.c.l.b16 %v238
  %v760 = vunpack.c.l.b16 %v239
  %v761 = vunpack.c.l.b16 %v240
  %v762 = vunpack.c.l.b16 %v241
  %v763 = vunpack.c.l.b16 %v242
  %v764 = vunpack.c.l.b16 %v243
  %v765 = vunpack.c.l.b16 %v244
  %v766 = vunpack.c.l.b16 %v245
  %v767 = vunpack.c.l.b16 %v246
  %v768 = vunpack.c.l.b16 %v247
  %v769 = vunpack.c.l.b16 %v248
  %v770 = vunpack.c.l.b16 %v249
  %v771 = vunpack.c.l.b16 %v250
  %v772 = vunpack.c.l.b16 %v251
  %v773 = vunpack.c.l.b16 %v252
  %v774 = vunpack.c.l.b16 %v253
  %v775 = vunpack.c.l.b16 %v254
  %v776 = vunpack.c.l.b16 %v255
  %v777 = vunpack.c.l.b16 %v256
  %v778 = vunpack.c.l.b16 %v257
  %v779 = vunpack.c.l.b16 %v258
  %v780 = vunpack.c.l.b16 %v259
  %v781 = vunpack.c.l.b16 %v260
  %v782 = vunpack.c.l.b16 %v261
  %v783 = vunpack.c.l.b16 %v262
  %v784 = vunpack.c.l.b16 %v263
  %v785 = vunpack.c.l.b16 %v264
  %v786 = vunpack.c.l.b16 %v265
  %v787 = vunpack.c.l.b16 %v266
  %v788 = vunpack.c.l.b16 %v267
  %v789 = vunpack.c.l.b16 %v268
  %v790 = vunpack.c.l.b16 %v269
  %v791 = vunpack.c.l.b16 %v270
  %v792 = vpack.c.b16 %v537, %v536
  %v793 = vpack.c.b16 %v539, %v538
  %v794 = vpack.c.b16 %v541, %v540
  %v795 = vpack.c.b16 %v543, %v542
  %v796 = vpack.c.b16 %v545, %v544
  %v797 = vpack.c.b16 %v547, %v546
  %v798 = vpack.c.b16 %v549, %v548
  %v799 = vpack.c.b16 %v551, %v550
  %v800 = vpack.c.b16 %v553, %v552
  %v801 = vpack.c.b16 %v555, %v554
  %v802 = vpack.c.b16 %v557, %v556
  %v803 = vpack.c.b16 %v559, %v558
  %v804 = vpack.c.b16 %v561, %v560
  %v805 = vpack.c.b16 %v563, %v562
  %v806 = vpack.c.b16 %v565, %v564
  %v807 = vpack.c.b16 %v567, %v566
  %v808 = vpack.c.b16 %v569, %v568
  %v809 = vpack.c.b16 %v571, %v570
  %v810 = vpack.c.b16 %v573, %v572
  %v811 = vpack.c.b16 %v575, %v574
  %v812 = vpack.c.b16 %v577, %v576
  %v813 = vpack.c.b16 %v579, %v578
  %v814 = vpack.c.b16 %v581, %v580
  %v815 = vpack.c.b16 %v583, %v582
  %v816 = vpack.c.b16 %v585, %v584
  %v817 = vpack.c.b16 %v587, %v586
  %v818 = vpack.c.b16 %v589, %v588
  %v819 = vpack.c.b16 %v591, %v590
  %v820 = vpack.c.b16 %v593, %v592
  %v821 = vpack.c.b16 %v595, %v594
  %v822 = vpack.c.b16 %v597, %v596
  %v823 = vpack.c.b16 %v599, %v598
  %v824 = vpack.c.b16 %v601, %v600
  %v825 = vpack.c.b16 %v603, %v602
  %v826 = vpack.c.b16 %v605, %v604
  %v827 = vpack.c.b16 %v607, %v606
  %v828 = vpack.c.b16 %v609, %v608
  %v829 = vpack.c.b16 %v611, %v610
  %v830 = vpack.c.b16 %v613, %v612
  %v831 = vpack.c.b16 %v615, %v614
  %v832 = vpack.c.b16 %v617, %v616
  %v833 = vpack.c.b16 %v619, %v618
  %v834 = vpack.c.b16 %v621, %v620
  %v835 = vpack.c.b16 %v623, %v622
  %v836 = vpack.c.b16 %v625, %v624
  %v837 = vpack.c.b16 %v627, %v626
  %v838 = vpack.c.b16 %v629, %v628
  %v839 = vpack.c.b16 %v631, %v630
  %v840 = vpack.c.b16 %v633, %v632
  %v841 = vpack.c.b16 %v635, %v634
  %v842 = vpack.c.b16 %v637, %v636
  %v843 = vpack.c.b16 %v639, %v638
  %v844 = vpack.c.b16 %v641, %v640
  %v845 = vpack.c.b16 %v643, %v642
  %v846 = vpack.c.b16 %v645, %v644
  %v847 = vpack.c.b16 %v647, %v646
  %v848 = vpack.c.b16 %v649, %v648
  %v849 = vpack.c.b16 %v651, %v650
  %v850 = vpack.c.b16 %v653, %v652
  %v851 = vpack.c.b16 %v655, %v654
  %v852 = vpack.c.b16 %v657, %v656
  %v853 = vpack.c.b16 %v659, %v658
  %v854 = vpack.c.b16 %v661, %v660
  %v855 = vpack.c.b16 %v663, %v662
  %v856 = vpack.c.b16 %v665, %v664
  %v857 = vpack.c.b16 %v667, %v666
  %v858 = vpack.c.b16 %v669, %v668
  %v859 = vpack.c.b16 %v671, %v670
  %v860 = vpack.c.b16 %v673, %v672
  %v861 = vpack.c.b16 %v675, %v674
  %v862 = vpack.c.b16 %v677, %v676
  %v863 = vpack.c.b16 %v679, %v678
  %v864 = vpack.c.b16 %v681, %v680
  %v865 = vpack.c.b16 %v683, %v682
  %v866 = vpack.c.b16 %v685, %v684
  %v867 = vpack.c.b16 %v687, %v686
  %v868 = vpack.c.b16 %v689, %v688
  %v869 = vpack.c.b16 %v691, %v690
  %v870 = vpack.c.b16 %v693, %v692
  %v871 = vpack.c.b16 %v695, %v694
  %v872 = vpack.c.b16 %v697, %v696
  %v873 = vpack.c.b16 %v699, %v698
  %v874 = vpack.c.b16 %v701, %v700
  %v875 = vpack.c.b16 %v703, %v702
  %v876 = vpack.c.b16 %v705, %v704
  %v877 = vpack.c.b16 %v707, %v706
  %v878 = vpack.c.b16 %v709, %v708
  %v879 = vpack.c.b16 %v711, %v710
  %v880 = vpack.c.b16 %v713, %v712
  %v881 = vpack.c.b16 %v715, %v714
  %v882 = vpack.c.b16 %v717, %v716
  %v883 = vpack.c.b16 %v719, %v718
  %v884 = vpack.c.b16 %v721, %v720
  %v885 = vpack.c.b16 %v723, %v722
  %v886 = vpack.c.b16 %v725, %v724
  %v887 = vpack.c.b16 %v727, %v726
  %v888 = vpack.c.b16 %v729, %v728
  %v889 = vpack.c.b16 %v731, %v730
  %v890 = vpack.c.b16 %v733, %v732
  %v891 = vpack.c.b16 %v735, %v734
  %v892 = vpack.c.b16 %v737, %v736
  %v893 = vpack.c.b16 %v739, %v738
  %v894 = vpack.c.b16 %v741, %v740
  %v895 = vpack.c.b16 %v743, %v742
  %v896 = vpack.c.b16 %v745, %v744
  %v897 = vpack.c.b16 %v747, %v746
  %v898 = vpack.c.b16 %v749, %v748
  %v899 = vpack.c.b16 %v751, %v750
  %v900 = vpack.c.b16 %v753, %v752
  %v901 = vpack.c.b16 %v755, %v754
  %v902 = vpack.c.b16 %v757, %v756
  %v903 = vpack.c.b16 %v759, %v758
  %v904 = vpack.c.b16 %v761, %v760
  %v905 = vpack.c.b16 %v763, %v762
  %v906 = vpack.c.b16 %v765, %v764
  %v907 = vpack.c.b16 %v767, %v766
  %v908 = vpack.c.b16 %v769, %v768
  %v909 = vpack.c.b16 %v771, %v770
  %v910 = vpack.c.b16 %v773, %v772
  %v911 = vpack.c.b16 %v775, %v774
  %v912 = vpack.c.b16 %v777, %v776
  %v913 = vpack.c.b16 %v779, %v778
  %v914 = vpack.c.b16 %v781, %v780
  %v915 = vpack.c.b16 %v783, %v782
  %v916 = vpack.c.b16 %v785, %v784
  %v917 = vpack.c.b16 %v787, %v786
  %v918 = vpack.c.b16 %v789, %v788
  %v919 = vpack.c.b16 %v791, %v790
  %v925 = vunpack.c.l.b16 %v271
  %v926 = vunpack.c.l.b16 %v272
  %v927 = vunpack.c.l.b16 %v273
  %v928 = vunpack.c.l.b16 %v274
  %v929 = vunpack.c.l.b16 %v275
  %v930 = vpack.c.b16 %v926, %v925
  %v931 = vpack.c.b16 %v928, %v927
  %v932 = vpack.c.b16 %v929, %v929
  %vm935 = vcmask 293888
  %v937 = vsel %vm935, %v792, 0
  %v940 = vsel %vm935, %v793, 0
  %v943 = vsel %vm935, %v794, 0
  %v946 = vsel %vm935, %v795, 0
  %v949 = vsel %vm935, %v796, 0
  %v952 = vsel %vm935, %v797, 0
  %v955 = vsel %vm935, %v798, 0
  %v958 = vsel %vm935, %v799, 0
  %v961 = vsel %vm935, %v800, 0
  %v964 = vsel %vm935, %v801, 0
  %v967 = vsel %vm935, %v802, 0
  %v970 = vsel %vm935, %v803, 0
  %v973 = vsel %vm935, %v804, 0
  %v976 = vsel %vm935, %v805, 0
  %v979 = vsel %vm935, %v806, 0
  %v982 = vsel %vm935, %v807, 0
  %v985 = vsel %vm935, %v808, 0
  %v988 = vsel %vm935, %v809, 0
  %v991 = vsel %vm935, %v810, 0
  %v994 = vsel %vm935, %v811, 0
  %v997 = vsel %vm935, %v812, 0
  %v1000 = vsel %vm935, %v813, 0
  %v1003 = vsel %vm935, %v814, 0
  %v1006 = vsel %vm935, %v815, 0
  %v1009 = vsel %vm935, %v816, 0
  %v1012 = vsel %vm935, %v817, 0
  %v1015 = vsel %vm935, %v818, 0
  %v1018 = vsel %vm935, %v819, 0
  %v1021 = vsel %vm935, %v820, 0
  %v1024 = vsel %vm935, %v821, 0
  %v1027 = vsel %vm935, %v822, 0
  %v1030 = vsel %vm935, %v823, 0
  %v1033 = vsel %vm935, %v824, 0
  %v1036 = vsel %vm935, %v825, 0
  %v1039 = vsel %vm935, %v826, 0
  %v1042 = vsel %vm935, %v827, 0
  %v1045 = vsel %vm935, %v828, 0
  %v1048 = vsel %vm935, %v829, 0
  %v1051 = vsel %vm935, %v830, 0
  %v1054 = vsel %vm935, %v831, 0
  %v1057 = vsel %vm935, %v832, 0
  %v1060 = vsel %vm935, %v833, 0
  %v1063 = vsel %vm935, %v834, 0
  %v1066 = vsel %vm935, %v835, 0
  %v1069 = vsel %vm935, %v836, 0
  %v1072 = vsel %vm935, %v837, 0
  %v1075 = vsel %vm935, %v838, 0
  %v1078 = vsel %vm935, %v839, 0
  %v1081 = vsel %vm935, %v840, 0
  %v1084 = vsel %vm935, %v841, 0
  %v1087 = vsel %vm935, %v842, 0
  %v1090 = vsel %vm935, %v843, 0
  %v1093 = vsel %vm935, %v844, 0
  %v1096 = vsel %vm935, %v845, 0
  %v1099 = vsel %vm935, %v846, 0
  %v1102 = vsel %vm935, %v847, 0
  %v1105 = vsel %vm935, %v848, 0
  %v1108 = vsel %vm935, %v849, 0
  %v1111 = vsel %vm935, %v850, 0
  %v1114 = vsel %vm935, %v851, 0
  %v1117 = vsel %vm935, %v852, 0
  %v1120 = vsel %vm935, %v853, 0
  %v1123 = vsel %vm935, %v854, 0
  %v1126 = vsel %vm935, %v855, 0
  %v1129 = vsel %vm935, %v856, 0
  %v1132 = vsel %vm935, %v857, 0
  %v1135 = vsel %vm935, %v858, 0
  %v1138 = vsel %vm935, %v859, 0
  %v1141 = vsel %vm935, %v860, 0
  %v1144 = vsel %vm935, %v861, 0
  %v1147 = vsel %vm935, %v862, 0
  %v1150 = vsel %vm935, %v863, 0
  %v1153 = vsel %vm935, %v864, 0
  %v1156 = vsel %vm935, %v865, 0
  %v1159 = vsel %vm935, %v866, 0
  %v1162 = vsel %vm935, %v867, 0
  %v1165 = vsel %vm935, %v868, 0
  %v1168 = vsel %vm935, %v869, 0
  %v1171 = vsel %vm935, %v870, 0
  %v1174 = vsel %vm935, %v871, 0
  %v1177 = vsel %vm935, %v872, 0
  %v1180 = vsel %vm935, %v873, 0
  %v1183 = vsel %vm935, %v874, 0
  %v1186 = vsel %vm935, %v875, 0
  %v1189 = vsel %vm935, %v876, 0
  %v1192 = vsel %vm935, %v877, 0
  %v1195 = vsel %vm935, %v878, 0
  %v1198 = vsel %vm935, %v879, 0
  %v1201 = vsel %vm935, %v880, 0
  %v1204 = vsel %vm935, %v881, 0
  %v1207 = vsel %vm935, %v882, 0
  %v1210 = vsel %vm935, %v883, 0
  %v1213 = vsel %vm935, %v884, 0
  %v1216 = vsel %vm935, %v885, 0
  %v1219 = vsel %vm935, %v886, 0
  %v1222 = vsel %vm935, %v887, 0
  %v1225 = vsel %vm935, %v888, 0
  %v1228 = vsel %vm935, %v889, 0
  %v1231 = vsel %vm935, %v890, 0
  %v1234 = vsel %vm935, %v891, 0
  %v1237 = vsel %vm935, %v892, 0
  %v1240 = vsel %vm935, %v893, 0
  %v1243 = vsel %vm935, %v894, 0
  %v1246 = vsel %vm935, %v895, 0
  %v1249 = vsel %vm935, %v896, 0
  %v1252 = vsel %vm935, %v897, 0
  %v1255 = vsel %vm935, %v898, 0
  %v1258 = vsel %vm935, %v899, 0
  %v1261 = vsel %vm935, %v900, 0
  %v1264 = vsel %vm935, %v901, 0
  %v1267 = vsel %vm935, %v902, 0
  %v1270 = vsel %vm935, %v903, 0
  %v1273 = vsel %vm935, %v904, 0
  %v1276 = vsel %vm935, %v905, 0
  %v1279 = vsel %vm935, %v906, 0
  %v1282 = vsel %vm935, %v907, 0
  %v1285 = vsel %vm935, %v908, 0
  %v1288 = vsel %vm935, %v909, 0
  %v1291 = vsel %vm935, %v910, 0
  %v1294 = vsel %vm935, %v911, 0
  %v1297 = vsel %vm935, %v912, 0
  %v1300 = vsel %vm935, %v913, 0
  %v1303 = vsel %vm935, %v914, 0
  %v1306 = vsel %vm935, %v915, 0
  %v1309 = vsel %vm935, %v916, 0
  %v1312 = vsel %vm935, %v917, 0
  %v1315 = vsel %vm935, %v918, 0
  %v1318 = vsel %vm935, %v919, 0
  %vm1320 = vcmask 1041408
  %v1322 = vsel %vm1320, %v932, 0
  %1324 = vmatpush.bf16.msra.mxu0 0
  %1325 = vmatpush.bf16.msra.mxu0 0
  %1326 = vmatpush.bf16.msra.mxu0 0
  %1327 = vmatpush.bf16.msra.mxu0 0
  %1328 = vmatpush.bf16.msra.mxu0 0
  %1329 = vmatpush.bf16.msra.mxu0 %v1322
  %1330 = vmatpush.bf16.msra.mxu0 %v931
  %1331 = vmatpush.bf16.msra.mxu0 %v930
  %1332 = vmatmul.bf16.gmra.mxu0 %v937
  %v1333 = vpop.f32.mrf.mxu0
  %v1334 = vadd.f32 %v278, %v1333
  %v1335 = vpop.f32.mrf.mxu0
  %v1336 = vadd.f32 %v278, %v1335
  %1337 = vmatmul.bf16.gmra.mxu0 %v940
  %v1338 = vpop.f32.mrf.mxu0
  %v1339 = vadd.f32 %v278, %v1338
  %v1340 = vpop.f32.mrf.mxu0
  %v1341 = vadd.f32 %v278, %v1340
  %1342 = vmatmul.bf16.gmra.mxu0 %v943
  %v1343 = vpop.f32.mrf.mxu0
  %v1344 = vadd.f32 %v278, %v1343
  %v1345 = vpop.f32.mrf.mxu0
  %v1346 = vadd.f32 %v278, %v1345
  %1347 = vmatmul.bf16.gmra.mxu0 %v946
  %v1348 = vpop.f32.mrf.mxu0
  %v1349 = vadd.f32 %v278, %v1348
  %v1350 = vpop.f32.mrf.mxu0
  %v1351 = vadd.f32 %v278, %v1350
  %1352 = vmatmul.bf16.gmra.mxu0 %v949
  %v1353 = vpop.f32.mrf.mxu0
  %v1354 = vadd.f32 %v278, %v1353
  %v1355 = vpop.f32.mrf.mxu0
  %v1356 = vadd.f32 %v278, %v1355
  %1357 = vmatmul.bf16.gmra.mxu0 %v952
  %v1358 = vpop.f32.mrf.mxu0
  %v1359 = vadd.f32 %v278, %v1358
  %v1360 = vpop.f32.mrf.mxu0
  %v1361 = vadd.f32 %v278, %v1360
  %1362 = vmatmul.bf16.gmra.mxu0 %v955
  %v1363 = vpop.f32.mrf.mxu0
  %v1364 = vadd.f32 %v278, %v1363
  %v1365 = vpop.f32.mrf.mxu0
  %v1366 = vadd.f32 %v278, %v1365
  %1367 = vmatmul.bf16.gmra.mxu0 %v958
  %v1368 = vpop.f32.mrf.mxu0
  %v1369 = vadd.f32 %v278, %v1368
  %v1370 = vpop.f32.mrf.mxu0
  %v1371 = vadd.f32 %v278, %v1370
  %1372 = vmatmul.bf16.gmra.mxu0 %v961
  %v1373 = vpop.f32.mrf.mxu0
  %v1374 = vadd.f32 %v278, %v1373
  %v1375 = vpop.f32.mrf.mxu0
  %v1376 = vadd.f32 %v278, %v1375
  %1377 = vmatmul.bf16.gmra.mxu0 %v964
  %v1378 = vpop.f32.mrf.mxu0
  %v1379 = vadd.f32 %v278, %v1378
  %v1380 = vpop.f32.mrf.mxu0
  %v1381 = vadd.f32 %v278, %v1380
  %1382 = vmatmul.bf16.gmra.mxu0 %v967
  %v1383 = vpop.f32.mrf.mxu0
  %v1384 = vadd.f32 %v278, %v1383
  %v1385 = vpop.f32.mrf.mxu0
  %v1386 = vadd.f32 %v278, %v1385
  %1387 = vmatmul.bf16.gmra.mxu0 %v970
  %v1388 = vpop.f32.mrf.mxu0
  %v1389 = vadd.f32 %v278, %v1388
  %v1390 = vpop.f32.mrf.mxu0
  %v1391 = vadd.f32 %v278, %v1390
  %1392 = vmatmul.bf16.gmra.mxu0 %v973
  %v1393 = vpop.f32.mrf.mxu0
  %v1394 = vadd.f32 %v278, %v1393
  %v1395 = vpop.f32.mrf.mxu0
  %v1396 = vadd.f32 %v278, %v1395
  %1397 = vmatmul.bf16.gmra.mxu0 %v976
  %v1398 = vpop.f32.mrf.mxu0
  %v1399 = vadd.f32 %v278, %v1398
  %v1400 = vpop.f32.mrf.mxu0
  %v1401 = vadd.f32 %v278, %v1400
  %1402 = vmatmul.bf16.gmra.mxu0 %v979
  %v1403 = vpop.f32.mrf.mxu0
  %v1404 = vadd.f32 %v278, %v1403
  %v1405 = vpop.f32.mrf.mxu0
  %v1406 = vadd.f32 %v278, %v1405
  %1407 = vmatmul.bf16.gmra.mxu0 %v982
  %v1408 = vpop.f32.mrf.mxu0
  %v1409 = vadd.f32 %v278, %v1408
  %v1410 = vpop.f32.mrf.mxu0
  %v1411 = vadd.f32 %v278, %v1410
  %1412 = vmatmul.bf16.gmra.mxu0 %v985
  %v1413 = vpop.f32.mrf.mxu0
  %v1414 = vadd.f32 %v278, %v1413
  %v1415 = vpop.f32.mrf.mxu0
  %v1416 = vadd.f32 %v278, %v1415
  %1417 = vmatmul.bf16.gmra.mxu0 %v988
  %v1418 = vpop.f32.mrf.mxu0
  %v1419 = vadd.f32 %v278, %v1418
  %v1420 = vpop.f32.mrf.mxu0
  %v1421 = vadd.f32 %v278, %v1420
  %1422 = vmatmul.bf16.gmra.mxu0 %v991
  %v1423 = vpop.f32.mrf.mxu0
  %v1424 = vadd.f32 %v278, %v1423
  %v1425 = vpop.f32.mrf.mxu0
  %v1426 = vadd.f32 %v278, %v1425
  %1427 = vmatmul.bf16.gmra.mxu0 %v994
  %v1428 = vpop.f32.mrf.mxu0
  %v1429 = vadd.f32 %v278, %v1428
  %v1430 = vpop.f32.mrf.mxu0
  %v1431 = vadd.f32 %v278, %v1430
  %1432 = vmatmul.bf16.gmra.mxu0 %v997
  %v1433 = vpop.f32.mrf.mxu0
  %v1434 = vadd.f32 %v278, %v1433
  %v1435 = vpop.f32.mrf.mxu0
  %v1436 = vadd.f32 %v278, %v1435
  %1437 = vmatmul.bf16.gmra.mxu0 %v1000
  %v1438 = vpop.f32.mrf.mxu0
  %v1439 = vadd.f32 %v278, %v1438
  %v1440 = vpop.f32.mrf.mxu0
  %v1441 = vadd.f32 %v278, %v1440
  %1442 = vmatmul.bf16.gmra.mxu0 %v1003
  %v1443 = vpop.f32.mrf.mxu0
  %v1444 = vadd.f32 %v278, %v1443
  %v1445 = vpop.f32.mrf.mxu0
  %v1446 = vadd.f32 %v278, %v1445
  %1447 = vmatmul.bf16.gmra.mxu0 %v1006
  %v1448 = vpop.f32.mrf.mxu0
  %v1449 = vadd.f32 %v278, %v1448
  %v1450 = vpop.f32.mrf.mxu0
  %v1451 = vadd.f32 %v278, %v1450
  %1452 = vmatmul.bf16.gmra.mxu0 %v1009
  %v1453 = vpop.f32.mrf.mxu0
  %v1454 = vadd.f32 %v278, %v1453
  %v1455 = vpop.f32.mrf.mxu0
  %v1456 = vadd.f32 %v278, %v1455
  %1457 = vmatmul.bf16.gmra.mxu0 %v1012
  %v1458 = vpop.f32.mrf.mxu0
  %v1459 = vadd.f32 %v278, %v1458
  %v1460 = vpop.f32.mrf.mxu0
  %v1461 = vadd.f32 %v278, %v1460
  %1462 = vmatmul.bf16.gmra.mxu0 %v1015
  %v1463 = vpop.f32.mrf.mxu0
  %v1464 = vadd.f32 %v278, %v1463
  %v1465 = vpop.f32.mrf.mxu0
  %v1466 = vadd.f32 %v278, %v1465
  %1467 = vmatmul.bf16.gmra.mxu0 %v1018
  %v1468 = vpop.f32.mrf.mxu0
  %v1469 = vadd.f32 %v278, %v1468
  %v1470 = vpop.f32.mrf.mxu0
  %v1471 = vadd.f32 %v278, %v1470
  %1472 = vmatmul.bf16.gmra.mxu0 %v1021
  %v1473 = vpop.f32.mrf.mxu0
  %v1474 = vadd.f32 %v278, %v1473
  %v1475 = vpop.f32.mrf.mxu0
  %v1476 = vadd.f32 %v278, %v1475
  %1477 = vmatmul.bf16.gmra.mxu0 %v1024
  %v1478 = vpop.f32.mrf.mxu0
  %v1479 = vadd.f32 %v278, %v1478
  %v1480 = vpop.f32.mrf.mxu0
  %v1481 = vadd.f32 %v278, %v1480
  %1482 = vmatmul.bf16.gmra.mxu0 %v1027
  %v1483 = vpop.f32.mrf.mxu0
  %v1484 = vadd.f32 %v278, %v1483
  %v1485 = vpop.f32.mrf.mxu0
  %v1486 = vadd.f32 %v278, %v1485
  %1487 = vmatmul.bf16.gmra.mxu0 %v1030
  %v1488 = vpop.f32.mrf.mxu0
  %v1489 = vadd.f32 %v278, %v1488
  %v1490 = vpop.f32.mrf.mxu0
  %v1491 = vadd.f32 %v278, %v1490
  %1492 = vmatmul.bf16.gmra.mxu0 %v1033
  %v1493 = vpop.f32.mrf.mxu0
  %v1494 = vadd.f32 %v278, %v1493
  %v1495 = vpop.f32.mrf.mxu0
  %v1496 = vadd.f32 %v278, %v1495
  %1497 = vmatmul.bf16.gmra.mxu0 %v1036
  %v1498 = vpop.f32.mrf.mxu0
  %v1499 = vadd.f32 %v278, %v1498
  %v1500 = vpop.f32.mrf.mxu0
  %v1501 = vadd.f32 %v278, %v1500
  %1502 = vmatmul.bf16.gmra.mxu0 %v1039
  %v1503 = vpop.f32.mrf.mxu0
  %v1504 = vadd.f32 %v278, %v1503
  %v1505 = vpop.f32.mrf.mxu0
  %v1506 = vadd.f32 %v278, %v1505
  %1507 = vmatmul.bf16.gmra.mxu0 %v1042
  %v1508 = vpop.f32.mrf.mxu0
  %v1509 = vadd.f32 %v278, %v1508
  %v1510 = vpop.f32.mrf.mxu0
  %v1511 = vadd.f32 %v278, %v1510
  %1512 = vmatmul.bf16.gmra.mxu0 %v1045
  %v1513 = vpop.f32.mrf.mxu0
  %v1514 = vadd.f32 %v278, %v1513
  %v1515 = vpop.f32.mrf.mxu0
  %v1516 = vadd.f32 %v278, %v1515
  %1517 = vmatmul.bf16.gmra.mxu0 %v1048
  %v1518 = vpop.f32.mrf.mxu0
  %v1519 = vadd.f32 %v278, %v1518
  %v1520 = vpop.f32.mrf.mxu0
  %v1521 = vadd.f32 %v278, %v1520
  %1522 = vmatmul.bf16.gmra.mxu0 %v1051
  %v1523 = vpop.f32.mrf.mxu0
  %v1524 = vadd.f32 %v278, %v1523
  %v1525 = vpop.f32.mrf.mxu0
  %v1526 = vadd.f32 %v278, %v1525
  %1527 = vmatmul.bf16.gmra.mxu0 %v1054
  %v1528 = vpop.f32.mrf.mxu0
  %v1529 = vadd.f32 %v278, %v1528
  %v1530 = vpop.f32.mrf.mxu0
  %v1531 = vadd.f32 %v278, %v1530
  %1532 = vmatmul.bf16.gmra.mxu0 %v1057
  %v1533 = vpop.f32.mrf.mxu0
  %v1534 = vadd.f32 %v278, %v1533
  %v1535 = vpop.f32.mrf.mxu0
  %v1536 = vadd.f32 %v278, %v1535
  %1537 = vmatmul.bf16.gmra.mxu0 %v1060
  %v1538 = vpop.f32.mrf.mxu0
  %v1539 = vadd.f32 %v278, %v1538
  %v1540 = vpop.f32.mrf.mxu0
  %v1541 = vadd.f32 %v278, %v1540
  %1542 = vmatmul.bf16.gmra.mxu0 %v1063
  %v1543 = vpop.f32.mrf.mxu0
  %v1544 = vadd.f32 %v278, %v1543
  %v1545 = vpop.f32.mrf.mxu0
  %v1546 = vadd.f32 %v278, %v1545
  %1547 = vmatmul.bf16.gmra.mxu0 %v1066
  %v1548 = vpop.f32.mrf.mxu0
  %v1549 = vadd.f32 %v278, %v1548
  %v1550 = vpop.f32.mrf.mxu0
  %v1551 = vadd.f32 %v278, %v1550
  %1552 = vmatmul.bf16.gmra.mxu0 %v1069
  %v1553 = vpop.f32.mrf.mxu0
  %v1554 = vadd.f32 %v278, %v1553
  %v1555 = vpop.f32.mrf.mxu0
  %v1556 = vadd.f32 %v278, %v1555
  %1557 = vmatmul.bf16.gmra.mxu0 %v1072
  %v1558 = vpop.f32.mrf.mxu0
  %v1559 = vadd.f32 %v278, %v1558
  %v1560 = vpop.f32.mrf.mxu0
  %v1561 = vadd.f32 %v278, %v1560
  %1562 = vmatmul.bf16.gmra.mxu0 %v1075
  %v1563 = vpop.f32.mrf.mxu0
  %v1564 = vadd.f32 %v278, %v1563
  %v1565 = vpop.f32.mrf.mxu0
  %v1566 = vadd.f32 %v278, %v1565
  %1567 = vmatmul.bf16.gmra.mxu0 %v1078
  %v1568 = vpop.f32.mrf.mxu0
  %v1569 = vadd.f32 %v278, %v1568
  %v1570 = vpop.f32.mrf.mxu0
  %v1571 = vadd.f32 %v278, %v1570
  %1572 = vmatmul.bf16.gmra.mxu0 %v1081
  %v1573 = vpop.f32.mrf.mxu0
  %v1574 = vadd.f32 %v278, %v1573
  %v1575 = vpop.f32.mrf.mxu0
  %v1576 = vadd.f32 %v278, %v1575
  %1577 = vmatmul.bf16.gmra.mxu0 %v1084
  %v1578 = vpop.f32.mrf.mxu0
  %v1579 = vadd.f32 %v278, %v1578
  %v1580 = vpop.f32.mrf.mxu0
  %v1581 = vadd.f32 %v278, %v1580
  %1582 = vmatmul.bf16.gmra.mxu0 %v1087
  %v1583 = vpop.f32.mrf.mxu0
  %v1584 = vadd.f32 %v278, %v1583
  %v1585 = vpop.f32.mrf.mxu0
  %v1586 = vadd.f32 %v278, %v1585
  %1587 = vmatmul.bf16.gmra.mxu0 %v1090
  %v1588 = vpop.f32.mrf.mxu0
  %v1589 = vadd.f32 %v278, %v1588
  %v1590 = vpop.f32.mrf.mxu0
  %v1591 = vadd.f32 %v278, %v1590
  %1592 = vmatmul.bf16.gmra.mxu0 %v1093
  %v1593 = vpop.f32.mrf.mxu0
  %v1594 = vadd.f32 %v278, %v1593
  %v1595 = vpop.f32.mrf.mxu0
  %v1596 = vadd.f32 %v278, %v1595
  %1597 = vmatmul.bf16.gmra.mxu0 %v1096
  %v1598 = vpop.f32.mrf.mxu0
  %v1599 = vadd.f32 %v278, %v1598
  %v1600 = vpop.f32.mrf.mxu0
  %v1601 = vadd.f32 %v278, %v1600
  %1602 = vmatmul.bf16.gmra.mxu0 %v1099
  %v1603 = vpop.f32.mrf.mxu0
  %v1604 = vadd.f32 %v278, %v1603
  %v1605 = vpop.f32.mrf.mxu0
  %v1606 = vadd.f32 %v278, %v1605
  %1607 = vmatmul.bf16.gmra.mxu0 %v1102
  %v1608 = vpop.f32.mrf.mxu0
  %v1609 = vadd.f32 %v278, %v1608
  %v1610 = vpop.f32.mrf.mxu0
  %v1611 = vadd.f32 %v278, %v1610
  %1612 = vmatmul.bf16.gmra.mxu0 %v1105
  %v1613 = vpop.f32.mrf.mxu0
  %v1614 = vadd.f32 %v278, %v1613
  %v1615 = vpop.f32.mrf.mxu0
  %v1616 = vadd.f32 %v278, %v1615
  %1617 = vmatmul.bf16.gmra.mxu0 %v1108
  %v1618 = vpop.f32.mrf.mxu0
  %v1619 = vadd.f32 %v278, %v1618
  %v1620 = vpop.f32.mrf.mxu0
  %v1621 = vadd.f32 %v278, %v1620
  %1622 = vmatmul.bf16.gmra.mxu0 %v1111
  %v1623 = vpop.f32.mrf.mxu0
  %v1624 = vadd.f32 %v278, %v1623
  %v1625 = vpop.f32.mrf.mxu0
  %v1626 = vadd.f32 %v278, %v1625
  %1627 = vmatmul.bf16.gmra.mxu0 %v1114
  %v1628 = vpop.f32.mrf.mxu0
  %v1629 = vadd.f32 %v278, %v1628
  %v1630 = vpop.f32.mrf.mxu0
  %v1631 = vadd.f32 %v278, %v1630
  %1632 = vmatmul.bf16.gmra.mxu0 %v1117
  %v1633 = vpop.f32.mrf.mxu0
  %v1634 = vadd.f32 %v278, %v1633
  %v1635 = vpop.f32.mrf.mxu0
  %v1636 = vadd.f32 %v278, %v1635
  %1637 = vmatmul.bf16.gmra.mxu0 %v1120
  %v1638 = vpop.f32.mrf.mxu0
  %v1639 = vadd.f32 %v278, %v1638
  %v1640 = vpop.f32.mrf.mxu0
  %v1641 = vadd.f32 %v278, %v1640
  %1642 = vmatmul.bf16.gmra.mxu0 %v1123
  %v1643 = vpop.f32.mrf.mxu0
  %v1644 = vadd.f32 %v278, %v1643
  %v1645 = vpop.f32.mrf.mxu0
  %v1646 = vadd.f32 %v278, %v1645
  %1647 = vmatmul.bf16.gmra.mxu0 %v1126
  %v1648 = vpop.f32.mrf.mxu0
  %v1649 = vadd.f32 %v278, %v1648
  %v1650 = vpop.f32.mrf.mxu0
  %v1651 = vadd.f32 %v278, %v1650
  %1652 = vmatmul.bf16.gmra.mxu0 %v1129
  %v1653 = vpop.f32.mrf.mxu0
  %v1654 = vadd.f32 %v278, %v1653
  %v1655 = vpop.f32.mrf.mxu0
  %v1656 = vadd.f32 %v278, %v1655
  %1657 = vmatmul.bf16.gmra.mxu0 %v1132
  %v1658 = vpop.f32.mrf.mxu0
  %v1659 = vadd.f32 %v278, %v1658
  %v1660 = vpop.f32.mrf.mxu0
  %v1661 = vadd.f32 %v278, %v1660
  %1662 = vmatmul.bf16.gmra.mxu0 %v1135
  %v1663 = vpop.f32.mrf.mxu0
  %v1664 = vadd.f32 %v278, %v1663
  %v1665 = vpop.f32.mrf.mxu0
  %v1666 = vadd.f32 %v278, %v1665
  %1667 = vmatmul.bf16.gmra.mxu0 %v1138
  %v1668 = vpop.f32.mrf.mxu0
  %v1669 = vadd.f32 %v278, %v1668
  %v1670 = vpop.f32.mrf.mxu0
  %v1671 = vadd.f32 %v278, %v1670
  %1672 = vmatmul.bf16.gmra.mxu0 %v1141
  %v1673 = vpop.f32.mrf.mxu0
  %v1674 = vadd.f32 %v278, %v1673
  %v1675 = vpop.f32.mrf.mxu0
  %v1676 = vadd.f32 %v278, %v1675
  %1677 = vmatmul.bf16.gmra.mxu0 %v1144
  %v1678 = vpop.f32.mrf.mxu0
  %v1679 = vadd.f32 %v278, %v1678
  %v1680 = vpop.f32.mrf.mxu0
  %v1681 = vadd.f32 %v278, %v1680
  %1682 = vmatmul.bf16.gmra.mxu0 %v1147
  %v1683 = vpop.f32.mrf.mxu0
  %v1684 = vadd.f32 %v278, %v1683
  %v1685 = vpop.f32.mrf.mxu0
  %v1686 = vadd.f32 %v278, %v1685
  %1687 = vmatmul.bf16.gmra.mxu0 %v1150
  %v1688 = vpop.f32.mrf.mxu0
  %v1689 = vadd.f32 %v278, %v1688
  %v1690 = vpop.f32.mrf.mxu0
  %v1691 = vadd.f32 %v278, %v1690
  %1692 = vmatmul.bf16.gmra.mxu0 %v1153
  %v1693 = vpop.f32.mrf.mxu0
  %v1694 = vadd.f32 %v278, %v1693
  %v1695 = vpop.f32.mrf.mxu0
  %v1696 = vadd.f32 %v278, %v1695
  %1697 = vmatmul.bf16.gmra.mxu0 %v1156
  %v1698 = vpop.f32.mrf.mxu0
  %v1699 = vadd.f32 %v278, %v1698
  %v1700 = vpop.f32.mrf.mxu0
  %v1701 = vadd.f32 %v278, %v1700
  %1702 = vmatmul.bf16.gmra.mxu0 %v1159
  %v1703 = vpop.f32.mrf.mxu0
  %v1704 = vadd.f32 %v278, %v1703
  %v1705 = vpop.f32.mrf.mxu0
  %v1706 = vadd.f32 %v278, %v1705
  %1707 = vmatmul.bf16.gmra.mxu0 %v1162
  %v1708 = vpop.f32.mrf.mxu0
  %v1709 = vadd.f32 %v278, %v1708
  %v1710 = vpop.f32.mrf.mxu0
  %v1711 = vadd.f32 %v278, %v1710
  %1712 = vmatmul.bf16.gmra.mxu0 %v1165
  %v1713 = vpop.f32.mrf.mxu0
  %v1714 = vadd.f32 %v278, %v1713
  %v1715 = vpop.f32.mrf.mxu0
  %v1716 = vadd.f32 %v278, %v1715
  %1717 = vmatmul.bf16.gmra.mxu0 %v1168
  %v1718 = vpop.f32.mrf.mxu0
  %v1719 = vadd.f32 %v278, %v1718
  %v1720 = vpop.f32.mrf.mxu0
  %v1721 = vadd.f32 %v278, %v1720
  %1722 = vmatmul.bf16.gmra.mxu0 %v1171
  %v1723 = vpop.f32.mrf.mxu0
  %v1724 = vadd.f32 %v278, %v1723
  %v1725 = vpop.f32.mrf.mxu0
  %v1726 = vadd.f32 %v278, %v1725
  %1727 = vmatmul.bf16.gmra.mxu0 %v1174
  %v1728 = vpop.f32.mrf.mxu0
  %v1729 = vadd.f32 %v278, %v1728
  %v1730 = vpop.f32.mrf.mxu0
  %v1731 = vadd.f32 %v278, %v1730
  %1732 = vmatmul.bf16.gmra.mxu0 %v1177
  %v1733 = vpop.f32.mrf.mxu0
  %v1734 = vadd.f32 %v278, %v1733
  %v1735 = vpop.f32.mrf.mxu0
  %v1736 = vadd.f32 %v278, %v1735
  %1737 = vmatmul.bf16.gmra.mxu0 %v1180
  %v1738 = vpop.f32.mrf.mxu0
  %v1739 = vadd.f32 %v278, %v1738
  %v1740 = vpop.f32.mrf.mxu0
  %v1741 = vadd.f32 %v278, %v1740
  %1742 = vmatmul.bf16.gmra.mxu0 %v1183
  %v1743 = vpop.f32.mrf.mxu0
  %v1744 = vadd.f32 %v278, %v1743
  %v1745 = vpop.f32.mrf.mxu0
  %v1746 = vadd.f32 %v278, %v1745
  %1747 = vmatmul.bf16.gmra.mxu0 %v1186
  %v1748 = vpop.f32.mrf.mxu0
  %v1749 = vadd.f32 %v278, %v1748
  %v1750 = vpop.f32.mrf.mxu0
  %v1751 = vadd.f32 %v278, %v1750
  %1752 = vmatmul.bf16.gmra.mxu0 %v1189
  %v1753 = vpop.f32.mrf.mxu0
  %v1754 = vadd.f32 %v278, %v1753
  %v1755 = vpop.f32.mrf.mxu0
  %v1756 = vadd.f32 %v278, %v1755
  %1757 = vmatmul.bf16.gmra.mxu0 %v1192
  %v1758 = vpop.f32.mrf.mxu0
  %v1759 = vadd.f32 %v278, %v1758
  %v1760 = vpop.f32.mrf.mxu0
  %v1761 = vadd.f32 %v278, %v1760
  %1762 = vmatmul.bf16.gmra.mxu0 %v1195
  %v1763 = vpop.f32.mrf.mxu0
  %v1764 = vadd.f32 %v278, %v1763
  %v1765 = vpop.f32.mrf.mxu0
  %v1766 = vadd.f32 %v278, %v1765
  %1767 = vmatmul.bf16.gmra.mxu0 %v1198
  %v1768 = vpop.f32.mrf.mxu0
  %v1769 = vadd.f32 %v278, %v1768
  %v1770 = vpop.f32.mrf.mxu0
  %v1771 = vadd.f32 %v278, %v1770
  %1772 = vmatmul.bf16.gmra.mxu0 %v1201
  %v1773 = vpop.f32.mrf.mxu0
  %v1774 = vadd.f32 %v278, %v1773
  %v1775 = vpop.f32.mrf.mxu0
  %v1776 = vadd.f32 %v278, %v1775
  %1777 = vmatmul.bf16.gmra.mxu0 %v1204
  %v1778 = vpop.f32.mrf.mxu0
  %v1779 = vadd.f32 %v278, %v1778
  %v1780 = vpop.f32.mrf.mxu0
  %v1781 = vadd.f32 %v278, %v1780
  %1782 = vmatmul.bf16.gmra.mxu0 %v1207
  %v1783 = vpop.f32.mrf.mxu0
  %v1784 = vadd.f32 %v278, %v1783
  %v1785 = vpop.f32.mrf.mxu0
  %v1786 = vadd.f32 %v278, %v1785
  %1787 = vmatmul.bf16.gmra.mxu0 %v1210
  %v1788 = vpop.f32.mrf.mxu0
  %v1789 = vadd.f32 %v278, %v1788
  %v1790 = vpop.f32.mrf.mxu0
  %v1791 = vadd.f32 %v278, %v1790
  %1792 = vmatmul.bf16.gmra.mxu0 %v1213
  %v1793 = vpop.f32.mrf.mxu0
  %v1794 = vadd.f32 %v278, %v1793
  %v1795 = vpop.f32.mrf.mxu0
  %v1796 = vadd.f32 %v278, %v1795
  %1797 = vmatmul.bf16.gmra.mxu0 %v1216
  %v1798 = vpop.f32.mrf.mxu0
  %v1799 = vadd.f32 %v278, %v1798
  %v1800 = vpop.f32.mrf.mxu0
  %v1801 = vadd.f32 %v278, %v1800
  %1802 = vmatmul.bf16.gmra.mxu0 %v1219
  %v1803 = vpop.f32.mrf.mxu0
  %v1804 = vadd.f32 %v278, %v1803
  %v1805 = vpop.f32.mrf.mxu0
  %v1806 = vadd.f32 %v278, %v1805
  %1807 = vmatmul.bf16.gmra.mxu0 %v1222
  %v1808 = vpop.f32.mrf.mxu0
  %v1809 = vadd.f32 %v278, %v1808
  %v1810 = vpop.f32.mrf.mxu0
  %v1811 = vadd.f32 %v278, %v1810
  %1812 = vmatmul.bf16.gmra.mxu0 %v1225
  %v1813 = vpop.f32.mrf.mxu0
  %v1814 = vadd.f32 %v278, %v1813
  %v1815 = vpop.f32.mrf.mxu0
  %v1816 = vadd.f32 %v278, %v1815
  %1817 = vmatmul.bf16.gmra.mxu0 %v1228
  %v1818 = vpop.f32.mrf.mxu0
  %v1819 = vadd.f32 %v278, %v1818
  %v1820 = vpop.f32.mrf.mxu0
  %v1821 = vadd.f32 %v278, %v1820
  %1822 = vmatmul.bf16.gmra.mxu0 %v1231
  %v1823 = vpop.f32.mrf.mxu0
  %v1824 = vadd.f32 %v278, %v1823
  %v1825 = vpop.f32.mrf.mxu0
  %v1826 = vadd.f32 %v278, %v1825
  %1827 = vmatmul.bf16.gmra.mxu0 %v1234
  %v1828 = vpop.f32.mrf.mxu0
  %v1829 = vadd.f32 %v278, %v1828
  %v1830 = vpop.f32.mrf.mxu0
  %v1831 = vadd.f32 %v278, %v1830
  %1832 = vmatmul.bf16.gmra.mxu0 %v1237
  %v1833 = vpop.f32.mrf.mxu0
  %v1834 = vadd.f32 %v278, %v1833
  %v1835 = vpop.f32.mrf.mxu0
  %v1836 = vadd.f32 %v278, %v1835
  %1837 = vmatmul.bf16.gmra.mxu0 %v1240
  %v1838 = vpop.f32.mrf.mxu0
  %v1839 = vadd.f32 %v278, %v1838
  %v1840 = vpop.f32.mrf.mxu0
  %v1841 = vadd.f32 %v278, %v1840
  %1842 = vmatmul.bf16.gmra.mxu0 %v1243
  %v1843 = vpop.f32.mrf.mxu0
  %v1844 = vadd.f32 %v278, %v1843
  %v1845 = vpop.f32.mrf.mxu0
  %v1846 = vadd.f32 %v278, %v1845
  %1847 = vmatmul.bf16.gmra.mxu0 %v1246
  %v1848 = vpop.f32.mrf.mxu0
  %v1849 = vadd.f32 %v278, %v1848
  %v1850 = vpop.f32.mrf.mxu0
  %v1851 = vadd.f32 %v278, %v1850
  %1852 = vmatmul.bf16.gmra.mxu0 %v1249
  %v1853 = vpop.f32.mrf.mxu0
  %v1854 = vadd.f32 %v278, %v1853
  %v1855 = vpop.f32.mrf.mxu0
  %v1856 = vadd.f32 %v278, %v1855
  %1857 = vmatmul.bf16.gmra.mxu0 %v1252
  %v1858 = vpop.f32.mrf.mxu0
  %v1859 = vadd.f32 %v278, %v1858
  %v1860 = vpop.f32.mrf.mxu0
  %v1861 = vadd.f32 %v278, %v1860
  %1862 = vmatmul.bf16.gmra.mxu0 %v1255
  %v1863 = vpop.f32.mrf.mxu0
  %v1864 = vadd.f32 %v278, %v1863
  %v1865 = vpop.f32.mrf.mxu0
  %v1866 = vadd.f32 %v278, %v1865
  %1867 = vmatmul.bf16.gmra.mxu0 %v1258
  %v1868 = vpop.f32.mrf.mxu0
  %v1869 = vadd.f32 %v278, %v1868
  %v1870 = vpop.f32.mrf.mxu0
  %v1871 = vadd.f32 %v278, %v1870
  %1872 = vmatmul.bf16.gmra.mxu0 %v1261
  %v1873 = vpop.f32.mrf.mxu0
  %v1874 = vadd.f32 %v278, %v1873
  %v1875 = vpop.f32.mrf.mxu0
  %v1876 = vadd.f32 %v278, %v1875
  %1877 = vmatmul.bf16.gmra.mxu0 %v1264
  %v1878 = vpop.f32.mrf.mxu0
  %v1879 = vadd.f32 %v278, %v1878
  %v1880 = vpop.f32.mrf.mxu0
  %v1881 = vadd.f32 %v278, %v1880
  %1882 = vmatmul.bf16.gmra.mxu0 %v1267
  %v1883 = vpop.f32.mrf.mxu0
  %v1884 = vadd.f32 %v278, %v1883
  %v1885 = vpop.f32.mrf.mxu0
  %v1886 = vadd.f32 %v278, %v1885
  %1887 = vmatmul.bf16.gmra.mxu0 %v1270
  %v1888 = vpop.f32.mrf.mxu0
  %v1889 = vadd.f32 %v278, %v1888
  %v1890 = vpop.f32.mrf.mxu0
  %v1891 = vadd.f32 %v278, %v1890
  %1892 = vmatmul.bf16.gmra.mxu0 %v1273
  %v1893 = vpop.f32.mrf.mxu0
  %v1894 = vadd.f32 %v278, %v1893
  %v1895 = vpop.f32.mrf.mxu0
  %v1896 = vadd.f32 %v278, %v1895
  %1897 = vmatmul.bf16.gmra.mxu0 %v1276
  %v1898 = vpop.f32.mrf.mxu0
  %v1899 = vadd.f32 %v278, %v1898
  %v1900 = vpop.f32.mrf.mxu0
  %v1901 = vadd.f32 %v278, %v1900
  %1902 = vmatmul.bf16.gmra.mxu0 %v1279
  %v1903 = vpop.f32.mrf.mxu0
  %v1904 = vadd.f32 %v278, %v1903
  %v1905 = vpop.f32.mrf.mxu0
  %v1906 = vadd.f32 %v278, %v1905
  %1907 = vmatmul.bf16.gmra.mxu0 %v1282
  %v1908 = vpop.f32.mrf.mxu0
  %v1909 = vadd.f32 %v278, %v1908
  %v1910 = vpop.f32.mrf.mxu0
  %v1911 = vadd.f32 %v278, %v1910
  %1912 = vmatmul.bf16.gmra.mxu0 %v1285
  %v1913 = vpop.f32.mrf.mxu0
  %v1914 = vadd.f32 %v278, %v1913
  %v1915 = vpop.f32.mrf.mxu0
  %v1916 = vadd.f32 %v278, %v1915
  %1917 = vmatmul.bf16.gmra.mxu0 %v1288
  %v1918 = vpop.f32.mrf.mxu0
  %v1919 = vadd.f32 %v278, %v1918
  %v1920 = vpop.f32.mrf.mxu0
  %v1921 = vadd.f32 %v278, %v1920
  %1922 = vmatmul.bf16.gmra.mxu0 %v1291
  %v1923 = vpop.f32.mrf.mxu0
  %v1924 = vadd.f32 %v278, %v1923
  %v1925 = vpop.f32.mrf.mxu0
  %v1926 = vadd.f32 %v278, %v1925
  %1927 = vmatmul.bf16.gmra.mxu0 %v1294
  %v1928 = vpop.f32.mrf.mxu0
  %v1929 = vadd.f32 %v278, %v1928
  %v1930 = vpop.f32.mrf.mxu0
  %v1931 = vadd.f32 %v278, %v1930
  %1932 = vmatmul.bf16.gmra.mxu0 %v1297
  %v1933 = vpop.f32.mrf.mxu0
  %v1934 = vadd.f32 %v278, %v1933
  %v1935 = vpop.f32.mrf.mxu0
  %v1936 = vadd.f32 %v278, %v1935
  %1937 = vmatmul.bf16.gmra.mxu0 %v1300
  %v1938 = vpop.f32.mrf.mxu0
  %v1939 = vadd.f32 %v278, %v1938
  %v1940 = vpop.f32.mrf.mxu0
  %v1941 = vadd.f32 %v278, %v1940
  %1942 = vmatmul.bf16.gmra.mxu0 %v1303
  %v1943 = vpop.f32.mrf.mxu0
  %v1944 = vadd.f32 %v278, %v1943
  %v1945 = vpop.f32.mrf.mxu0
  %v1946 = vadd.f32 %v278, %v1945
  %1947 = vmatmul.bf16.gmra.mxu0 %v1306
  %v1948 = vpop.f32.mrf.mxu0
  %v1949 = vadd.f32 %v278, %v1948
  %v1950 = vpop.f32.mrf.mxu0
  %v1951 = vadd.f32 %v278, %v1950
  %1952 = vmatmul.bf16.gmra.mxu0 %v1309
  %v1953 = vpop.f32.mrf.mxu0
  %v1954 = vadd.f32 %v278, %v1953
  %v1955 = vpop.f32.mrf.mxu0
  %v1956 = vadd.f32 %v278, %v1955
  %1957 = vmatmul.bf16.gmra.mxu0 %v1312
  %v1958 = vpop.f32.mrf.mxu0
  %v1959 = vadd.f32 %v278, %v1958
  %v1960 = vpop.f32.mrf.mxu0
  %v1961 = vadd.f32 %v278, %v1960
  %1962 = vmatmul.bf16.gmra.mxu0 %v1315
  %v1963 = vpop.f32.mrf.mxu0
  %v1964 = vadd.f32 %v278, %v1963
  %v1965 = vpop.f32.mrf.mxu0
  %v1966 = vadd.f32 %v278, %v1965
  %1967 = vmatmul.bf16.gmra.mxu0 %v1318
  %v1968 = vpop.f32.mrf.mxu0
  %v1969 = vadd.f32 %v278, %v1968
  %v1970 = vpop.f32.mrf.mxu0
  %v1971 = vadd.f32 %v278, %v1970
  %1972 = vdwg.mxu0
  %v1973 = vmax.f32 %v1334, 0.0
  %v1974 = vmax.f32 %v1336, 0.0
  %v1975 = vmax.f32 %v1339, 0.0
  %v1976 = vmax.f32 %v1341, 0.0
  %v1977 = vmax.f32 %v1344, 0.0
  %v1978 = vmax.f32 %v1346, 0.0
  %v1979 = vmax.f32 %v1349, 0.0
  %v1980 = vmax.f32 %v1351, 0.0
  %v1981 = vmax.f32 %v1354, 0.0
  %v1982 = vmax.f32 %v1356, 0.0
  %v1983 = vmax.f32 %v1359, 0.0
  %v1984 = vmax.f32 %v1361, 0.0
  %v1985 = vmax.f32 %v1364, 0.0
  %v1986 = vmax.f32 %v1366, 0.0
  %v1987 = vmax.f32 %v1369, 0.0
  %v1988 = vmax.f32 %v1371, 0.0
  %v1989 = vmax.f32 %v1374, 0.0
  %v1990 = vmax.f32 %v1376, 0.0
  %v1991 = vmax.f32 %v1379, 0.0
  %v1992 = vmax.f32 %v1381, 0.0
  %v1993 = vmax.f32 %v1384, 0.0
  %v1994 = vmax.f32 %v1386, 0.0
  %v1995 = vmax.f32 %v1389, 0.0
  %v1996 = vmax.f32 %v1391, 0.0
  %v1997 = vmax.f32 %v1394, 0.0
  %v1998 = vmax.f32 %v1396, 0.0
  %v1999 = vmax.f32 %v1399, 0.0
  %v2000 = vmax.f32 %v1401, 0.0
  %v2001 = vmax.f32 %v1404, 0.0
  %v2002 = vmax.f32 %v1406, 0.0
  %v2003 = vmax.f32 %v1409, 0.0
  %v2004 = vmax.f32 %v1411, 0.0
  %v2005 = vmax.f32 %v1414, 0.0
  %v2006 = vmax.f32 %v1416, 0.0
  %v2007 = vmax.f32 %v1419, 0.0
  %v2008 = vmax.f32 %v1421, 0.0
  %v2009 = vmax.f32 %v1424, 0.0
  %v2010 = vmax.f32 %v1426, 0.0
  %v2011 = vmax.f32 %v1429, 0.0
  %v2012 = vmax.f32 %v1431, 0.0
  %v2013 = vmax.f32 %v1434, 0.0
  %v2014 = vmax.f32 %v1436, 0.0
  %v2015 = vmax.f32 %v1439, 0.0
  %v2016 = vmax.f32 %v1441, 0.0
  %v2017 = vmax.f32 %v1444, 0.0
  %v2018 = vmax.f32 %v1446, 0.0
  %v2019 = vmax.f32 %v1449, 0.0
  %v2020 = vmax.f32 %v1451, 0.0
  %v2021 = vmax.f32 %v1454, 0.0
  %v2022 = vmax.f32 %v1456, 0.0
  %v2023 = vmax.f32 %v1459, 0.0
  %v2024 = vmax.f32 %v1461, 0.0
  %v2025 = vmax.f32 %v1464, 0.0
  %v2026 = vmax.f32 %v1466, 0.0
  %v2027 = vmax.f32 %v1469, 0.0
  %v2028 = vmax.f32 %v1471, 0.0
  %v2029 = vmax.f32 %v1474, 0.0
  %v2030 = vmax.f32 %v1476, 0.0
  %v2031 = vmax.f32 %v1479, 0.0
  %v2032 = vmax.f32 %v1481, 0.0
  %v2033 = vmax.f32 %v1484, 0.0
  %v2034 = vmax.f32 %v1486, 0.0
  %v2035 = vmax.f32 %v1489, 0.0
  %v2036 = vmax.f32 %v1491, 0.0
  %v2037 = vmax.f32 %v1494, 0.0
  %v2038 = vmax.f32 %v1496, 0.0
  %v2039 = vmax.f32 %v1499, 0.0
  %v2040 = vmax.f32 %v1501, 0.0
  %v2041 = vmax.f32 %v1504, 0.0
  %v2042 = vmax.f32 %v1506, 0.0
  %v2043 = vmax.f32 %v1509, 0.0
  %v2044 = vmax.f32 %v1511, 0.0
  %v2045 = vmax.f32 %v1514, 0.0
  %v2046 = vmax.f32 %v1516, 0.0
  %v2047 = vmax.f32 %v1519, 0.0
  %v2048 = vmax.f32 %v1521, 0.0
  %v2049 = vmax.f32 %v1524, 0.0
  %v2050 = vmax.f32 %v1526, 0.0
  %v2051 = vmax.f32 %v1529, 0.0
  %v2052 = vmax.f32 %v1531, 0.0
  %v2053 = vmax.f32 %v1534, 0.0
  %v2054 = vmax.f32 %v1536, 0.0
  %v2055 = vmax.f32 %v1539, 0.0
  %v2056 = vmax.f32 %v1541, 0.0
  %v2057 = vmax.f32 %v1544, 0.0
  %v2058 = vmax.f32 %v1546, 0.0
  %v2059 = vmax.f32 %v1549, 0.0
  %v2060 = vmax.f32 %v1551, 0.0
  %v2061 = vmax.f32 %v1554, 0.0
  %v2062 = vmax.f32 %v1556, 0.0
  %v2063 = vmax.f32 %v1559, 0.0
  %v2064 = vmax.f32 %v1561, 0.0
  %v2065 = vmax.f32 %v1564, 0.0
  %v2066 = vmax.f32 %v1566, 0.0
  %v2067 = vmax.f32 %v1569, 0.0
  %v2068 = vmax.f32 %v1571, 0.0
  %v2069 = vmax.f32 %v1574, 0.0
  %v2070 = vmax.f32 %v1576, 0.0
  %v2071 = vmax.f32 %v1579, 0.0
  %v2072 = vmax.f32 %v1581, 0.0
  %v2073 = vmax.f32 %v1584, 0.0
  %v2074 = vmax.f32 %v1586, 0.0
  %v2075 = vmax.f32 %v1589, 0.0
  %v2076 = vmax.f32 %v1591, 0.0
  %v2077 = vmax.f32 %v1594, 0.0
  %v2078 = vmax.f32 %v1596, 0.0
  %v2079 = vmax.f32 %v1599, 0.0
  %v2080 = vmax.f32 %v1601, 0.0
  %v2081 = vmax.f32 %v1604, 0.0
  %v2082 = vmax.f32 %v1606, 0.0
  %v2083 = vmax.f32 %v1609, 0.0
  %v2084 = vmax.f32 %v1611, 0.0
  %v2085 = vmax.f32 %v1614, 0.0
  %v2086 = vmax.f32 %v1616, 0.0
  %v2087 = vmax.f32 %v1619, 0.0
  %v2088 = vmax.f32 %v1621, 0.0
  %v2089 = vmax.f32 %v1624, 0.0
  %v2090 = vmax.f32 %v1626, 0.0
  %v2091 = vmax.f32 %v1629, 0.0
  %v2092 = vmax.f32 %v1631, 0.0
  %v2093 = vmax.f32 %v1634, 0.0
  %v2094 = vmax.f32 %v1636, 0.0
  %v2095 = vmax.f32 %v1639, 0.0
  %v2096 = vmax.f32 %v1641, 0.0
  %v2097 = vmax.f32 %v1644, 0.0
  %v2098 = vmax.f32 %v1646, 0.0
  %v2099 = vmax.f32 %v1649, 0.0
  %v2100 = vmax.f32 %v1651, 0.0
  %v2101 = vmax.f32 %v1654, 0.0
  %v2102 = vmax.f32 %v1656, 0.0
  %v2103 = vmax.f32 %v1659, 0.0
  %v2104 = vmax.f32 %v1661, 0.0
  %v2105 = vmax.f32 %v1664, 0.0
  %v2106 = vmax.f32 %v1666, 0.0
  %v2107 = vmax.f32 %v1669, 0.0
  %v2108 = vmax.f32 %v1671, 0.0
  %v2109 = vmax.f32 %v1674, 0.0
  %v2110 = vmax.f32 %v1676, 0.0
  %v2111 = vmax.f32 %v1679, 0.0
  %v2112 = vmax.f32 %v1681, 0.0
  %v2113 = vmax.f32 %v1684, 0.0
  %v2114 = vmax.f32 %v1686, 0.0
  %v2115 = vmax.f32 %v1689, 0.0
  %v2116 = vmax.f32 %v1691, 0.0
  %v2117 = vmax.f32 %v1694, 0.0
  %v2118 = vmax.f32 %v1696, 0.0
  %v2119 = vmax.f32 %v1699, 0.0
  %v2120 = vmax.f32 %v1701, 0.0
  %v2121 = vmax.f32 %v1704, 0.0
  %v2122 = vmax.f32 %v1706, 0.0
  %v2123 = vmax.f32 %v1709, 0.0
  %v2124 = vmax.f32 %v1711, 0.0
  %v2125 = vmax.f32 %v1714, 0.0
  %v2126 = vmax.f32 %v1716, 0.0
  %v2127 = vmax.f32 %v1719, 0.0
  %v2128 = vmax.f32 %v1721, 0.0
  %v2129 = vmax.f32 %v1724, 0.0
  %v2130 = vmax.f32 %v1726, 0.0
  %v2131 = vmax.f32 %v1729, 0.0
  %v2132 = vmax.f32 %v1731, 0.0
  %v2133 = vmax.f32 %v1734, 0.0
  %v2134 = vmax.f32 %v1736, 0.0
  %v2135 = vmax.f32 %v1739, 0.0
  %v2136 = vmax.f32 %v1741, 0.0
  %v2137 = vmax.f32 %v1744, 0.0
  %v2138 = vmax.f32 %v1746, 0.0
  %v2139 = vmax.f32 %v1749, 0.0
  %v2140 = vmax.f32 %v1751, 0.0
  %v2141 = vmax.f32 %v1754, 0.0
  %v2142 = vmax.f32 %v1756, 0.0
  %v2143 = vmax.f32 %v1759, 0.0
  %v2144 = vmax.f32 %v1761, 0.0
  %v2145 = vmax.f32 %v1764, 0.0
  %v2146 = vmax.f32 %v1766, 0.0
  %v2147 = vmax.f32 %v1769, 0.0
  %v2148 = vmax.f32 %v1771, 0.0
  %v2149 = vmax.f32 %v1774, 0.0
  %v2150 = vmax.f32 %v1776, 0.0
  %v2151 = vmax.f32 %v1779, 0.0
  %v2152 = vmax.f32 %v1781, 0.0
  %v2153 = vmax.f32 %v1784, 0.0
  %v2154 = vmax.f32 %v1786, 0.0
  %v2155 = vmax.f32 %v1789, 0.0
  %v2156 = vmax.f32 %v1791, 0.0
  %v2157 = vmax.f32 %v1794, 0.0
  %v2158 = vmax.f32 %v1796, 0.0
  %v2159 = vmax.f32 %v1799, 0.0
  %v2160 = vmax.f32 %v1801, 0.0
  %v2161 = vmax.f32 %v1804, 0.0
  %v2162 = vmax.f32 %v1806, 0.0
  %v2163 = vmax.f32 %v1809, 0.0
  %v2164 = vmax.f32 %v1811, 0.0
  %v2165 = vmax.f32 %v1814, 0.0
  %v2166 = vmax.f32 %v1816, 0.0
  %v2167 = vmax.f32 %v1819, 0.0
  %v2168 = vmax.f32 %v1821, 0.0
  %v2169 = vmax.f32 %v1824, 0.0
  %v2170 = vmax.f32 %v1826, 0.0
  %v2171 = vmax.f32 %v1829, 0.0
  %v2172 = vmax.f32 %v1831, 0.0
  %v2173 = vmax.f32 %v1834, 0.0
  %v2174 = vmax.f32 %v1836, 0.0
  %v2175 = vmax.f32 %v1839, 0.0
  %v2176 = vmax.f32 %v1841, 0.0
  %v2177 = vmax.f32 %v1844, 0.0
  %v2178 = vmax.f32 %v1846, 0.0
  %v2179 = vmax.f32 %v1849, 0.0
  %v2180 = vmax.f32 %v1851, 0.0
  %v2181 = vmax.f32 %v1854, 0.0
  %v2182 = vmax.f32 %v1856, 0.0
  %v2183 = vmax.f32 %v1859, 0.0
  %v2184 = vmax.f32 %v1861, 0.0
  %v2185 = vmax.f32 %v1864, 0.0
  %v2186 = vmax.f32 %v1866, 0.0
  %v2187 = vmax.f32 %v1869, 0.0
  %v2188 = vmax.f32 %v1871, 0.0
  %v2189 = vmax.f32 %v1874, 0.0
  %v2190 = vmax.f32 %v1876, 0.0
  %v2191 = vmax.f32 %v1879, 0.0
  %v2192 = vmax.f32 %v1881, 0.0
  %v2193 = vmax.f32 %v1884, 0.0
  %v2194 = vmax.f32 %v1886, 0.0
  %v2195 = vmax.f32 %v1889, 0.0
  %v2196 = vmax.f32 %v1891, 0.0
  %v2197 = vmax.f32 %v1894, 0.0
  %v2198 = vmax.f32 %v1896, 0.0
  %v2199 = vmax.f32 %v1899, 0.0
  %v2200 = vmax.f32 %v1901, 0.0
  %v2201 = vmax.f32 %v1904, 0.0
  %v2202 = vmax.f32 %v1906, 0.0
  %v2203 = vmax.f32 %v1909, 0.0
  %v2204 = vmax.f32 %v1911, 0.0
  %v2205 = vmax.f32 %v1914, 0.0
  %v2206 = vmax.f32 %v1916, 0.0
  %v2207 = vmax.f32 %v1919, 0.0
  %v2208 = vmax.f32 %v1921, 0.0
  %v2209 = vmax.f32 %v1924, 0.0
  %v2210 = vmax.f32 %v1926, 0.0
  %v2211 = vmax.f32 %v1929, 0.0
  %v2212 = vmax.f32 %v1931, 0.0
  %v2213 = vmax.f32 %v1934, 0.0
  %v2214 = vmax.f32 %v1936, 0.0
  %v2215 = vmax.f32 %v1939, 0.0
  %v2216 = vmax.f32 %v1941, 0.0
  %v2217 = vmax.f32 %v1944, 0.0
  %v2218 = vmax.f32 %v1946, 0.0
  %v2219 = vmax.f32 %v1949, 0.0
  %v2220 = vmax.f32 %v1951, 0.0
  %v2221 = vmax.f32 %v1954, 0.0
  %v2222 = vmax.f32 %v1956, 0.0
  %v2223 = vmax.f32 %v1959, 0.0
  %v2224 = vmax.f32 %v1961, 0.0
  %v2225 = vmax.f32 %v1964, 0.0
  %v2226 = vmax.f32 %v1966, 0.0
  %v2227 = vmax.f32 %v1969, 0.0
  %v2228 = vmax.f32 %v1971, 0.0
  %v2229 = vadd.f32 %v1973, %v1974
  %v2230 = vadd.f32 %v2229, %v1975
  %v2231 = vadd.f32 %v2230, %v1976
  %v2232 = vadd.f32 %v2231, %v1977
  %v2233 = vadd.f32 %v2232, %v1978
  %v2234 = vadd.f32 %v2233, %v1979
  %v2235 = vadd.f32 %v2234, %v1980
  %v2236 = vadd.f32 %v2235, %v1981
  %v2237 = vadd.f32 %v2236, %v1982
  %v2238 = vadd.f32 %v2237, %v1983
  %v2239 = vadd.f32 %v2238, %v1984
  %v2240 = vadd.f32 %v2239, %v1985
  %v2241 = vadd.f32 %v2240, %v1986
  %v2242 = vadd.f32 %v2241, %v1987
  %v2243 = vadd.f32 %v2242, %v1988
  %v2244 = vadd.f32 %v2243, %v1989
  %v2245 = vadd.f32 %v2244, %v1990
  %v2246 = vadd.f32 %v2245, %v1991
  %v2247 = vadd.f32 %v2246, %v1992
  %v2248 = vadd.f32 %v2247, %v1993
  %v2249 = vadd.f32 %v2248, %v1994
  %v2250 = vadd.f32 %v2249, %v1995
  %v2251 = vadd.f32 %v2250, %v1996
  %v2252 = vadd.f32 %v2251, %v1997
  %v2253 = vadd.f32 %v2252, %v1998
  %v2254 = vadd.f32 %v2253, %v1999
  %v2255 = vadd.f32 %v2254, %v2000
  %v2256 = vadd.f32 %v2255, %v2001
  %v2257 = vadd.f32 %v2256, %v2002
  %v2258 = vadd.f32 %v2257, %v2003
  %v2259 = vadd.f32 %v2258, %v2004
  %v2260 = vrot.slane %v2259, 4
  %v2261 = vadd.f32 %v2259, %v2260
  %v2262 = vrot.slane %v2261, 2
  %v2263 = vadd.f32 %v2261, %v2262
  %v2264 = vrot.slane %v2263, 1
  %v2265 = vadd.f32 %v2263, %v2264
  %v2266 = vadd.f32 %v2005, %v2006
  %v2267 = vadd.f32 %v2266, %v2007
  %v2268 = vadd.f32 %v2267, %v2008
  %v2269 = vadd.f32 %v2268, %v2009
  %v2270 = vadd.f32 %v2269, %v2010
  %v2271 = vadd.f32 %v2270, %v2011
  %v2272 = vadd.f32 %v2271, %v2012
  %v2273 = vadd.f32 %v2272, %v2013
  %v2274 = vadd.f32 %v2273, %v2014
  %v2275 = vadd.f32 %v2274, %v2015
  %v2276 = vadd.f32 %v2275, %v2016
  %v2277 = vadd.f32 %v2276, %v2017
  %v2278 = vadd.f32 %v2277, %v2018
  %v2279 = vadd.f32 %v2278, %v2019
  %v2280 = vadd.f32 %v2279, %v2020
  %v2281 = vadd.f32 %v2280, %v2021
  %v2282 = vadd.f32 %v2281, %v2022
  %v2283 = vadd.f32 %v2282, %v2023
  %v2284 = vadd.f32 %v2283, %v2024
  %v2285 = vadd.f32 %v2284, %v2025
  %v2286 = vadd.f32 %v2285, %v2026
  %v2287 = vadd.f32 %v2286, %v2027
  %v2288 = vadd.f32 %v2287, %v2028
  %v2289 = vadd.f32 %v2288, %v2029
  %v2290 = vadd.f32 %v2289, %v2030
  %v2291 = vadd.f32 %v2290, %v2031
  %v2292 = vadd.f32 %v2291, %v2032
  %v2293 = vadd.f32 %v2292, %v2033
  %v2294 = vadd.f32 %v2293, %v2034
  %v2295 = vadd.f32 %v2294, %v2035
  %v2296 = vadd.f32 %v2295, %v2036
  %v2297 = vrot.slane %v2296, 4
  %v2298 = vadd.f32 %v2296, %v2297
  %v2299 = vrot.slane %v2298, 2
  %v2300 = vadd.f32 %v2298, %v2299
  %v2301 = vrot.slane %v2300, 1
  %v2302 = vadd.f32 %v2300, %v2301
  %v2303 = vadd.f32 %v2037, %v2038
  %v2304 = vadd.f32 %v2303, %v2039
  %v2305 = vadd.f32 %v2304, %v2040
  %v2306 = vadd.f32 %v2305, %v2041
  %v2307 = vadd.f32 %v2306, %v2042
  %v2308 = vadd.f32 %v2307, %v2043
  %v2309 = vadd.f32 %v2308, %v2044
  %v2310 = vadd.f32 %v2309, %v2045
  %v2311 = vadd.f32 %v2310, %v2046
  %v2312 = vadd.f32 %v2311, %v2047
  %v2313 = vadd.f32 %v2312, %v2048
  %v2314 = vadd.f32 %v2313, %v2049
  %v2315 = vadd.f32 %v2314, %v2050
  %v2316 = vadd.f32 %v2315, %v2051
  %v2317 = vadd.f32 %v2316, %v2052
  %v2318 = vadd.f32 %v2317, %v2053
  %v2319 = vadd.f32 %v2318, %v2054
  %v2320 = vadd.f32 %v2319, %v2055
  %v2321 = vadd.f32 %v2320, %v2056
  %v2322 = vadd.f32 %v2321, %v2057
  %v2323 = vadd.f32 %v2322, %v2058
  %v2324 = vadd.f32 %v2323, %v2059
  %v2325 = vadd.f32 %v2324, %v2060
  %v2326 = vadd.f32 %v2325, %v2061
  %v2327 = vadd.f32 %v2326, %v2062
  %v2328 = vadd.f32 %v2327, %v2063
  %v2329 = vadd.f32 %v2328, %v2064
  %v2330 = vadd.f32 %v2329, %v2065
  %v2331 = vadd.f32 %v2330, %v2066
  %v2332 = vadd.f32 %v2331, %v2067
  %v2333 = vadd.f32 %v2332, %v2068
  %v2334 = vrot.slane %v2333, 4
  %v2335 = vadd.f32 %v2333, %v2334
  %v2336 = vrot.slane %v2335, 2
  %v2337 = vadd.f32 %v2335, %v2336
  %v2338 = vrot.slane %v2337, 1
  %v2339 = vadd.f32 %v2337, %v2338
  %v2340 = vadd.f32 %v2069, %v2070
  %v2341 = vadd.f32 %v2340, %v2071
  %v2342 = vadd.f32 %v2341, %v2072
  %v2343 = vadd.f32 %v2342, %v2073
  %v2344 = vadd.f32 %v2343, %v2074
  %v2345 = vadd.f32 %v2344, %v2075
  %v2346 = vadd.f32 %v2345, %v2076
  %v2347 = vadd.f32 %v2346, %v2077
  %v2348 = vadd.f32 %v2347, %v2078
  %v2349 = vadd.f32 %v2348, %v2079
  %v2350 = vadd.f32 %v2349, %v2080
  %v2351 = vadd.f32 %v2350, %v2081
  %v2352 = vadd.f32 %v2351, %v2082
  %v2353 = vadd.f32 %v2352, %v2083
  %v2354 = vadd.f32 %v2353, %v2084
  %v2355 = vadd.f32 %v2354, %v2085
  %v2356 = vadd.f32 %v2355, %v2086
  %v2357 = vadd.f32 %v2356, %v2087
  %v2358 = vadd.f32 %v2357, %v2088
  %v2359 = vadd.f32 %v2358, %v2089
  %v2360 = vadd.f32 %v2359, %v2090
  %v2361 = vadd.f32 %v2360, %v2091
  %v2362 = vadd.f32 %v2361, %v2092
  %v2363 = vadd.f32 %v2362, %v2093
  %v2364 = vadd.f32 %v2363, %v2094
  %v2365 = vadd.f32 %v2364, %v2095
  %v2366 = vadd.f32 %v2365, %v2096
  %v2367 = vadd.f32 %v2366, %v2097
  %v2368 = vadd.f32 %v2367, %v2098
  %v2369 = vadd.f32 %v2368, %v2099
  %v2370 = vadd.f32 %v2369, %v2100
  %v2371 = vrot.slane %v2370, 4
  %v2372 = vadd.f32 %v2370, %v2371
  %v2373 = vrot.slane %v2372, 2
  %v2374 = vadd.f32 %v2372, %v2373
  %v2375 = vrot.slane %v2374, 1
  %v2376 = vadd.f32 %v2374, %v2375
  %v2377 = vadd.f32 %v2101, %v2102
  %v2378 = vadd.f32 %v2377, %v2103
  %v2379 = vadd.f32 %v2378, %v2104
  %v2380 = vadd.f32 %v2379, %v2105
  %v2381 = vadd.f32 %v2380, %v2106
  %v2382 = vadd.f32 %v2381, %v2107
  %v2383 = vadd.f32 %v2382, %v2108
  %v2384 = vadd.f32 %v2383, %v2109
  %v2385 = vadd.f32 %v2384, %v2110
  %v2386 = vadd.f32 %v2385, %v2111
  %v2387 = vadd.f32 %v2386, %v2112
  %v2388 = vadd.f32 %v2387, %v2113
  %v2389 = vadd.f32 %v2388, %v2114
  %v2390 = vadd.f32 %v2389, %v2115
  %v2391 = vadd.f32 %v2390, %v2116
  %v2392 = vadd.f32 %v2391, %v2117
  %v2393 = vadd.f32 %v2392, %v2118
  %v2394 = vadd.f32 %v2393, %v2119
  %v2395 = vadd.f32 %v2394, %v2120
  %v2396 = vadd.f32 %v2395, %v2121
  %v2397 = vadd.f32 %v2396, %v2122
  %v2398 = vadd.f32 %v2397, %v2123
  %v2399 = vadd.f32 %v2398, %v2124
  %v2400 = vadd.f32 %v2399, %v2125
  %v2401 = vadd.f32 %v2400, %v2126
  %v2402 = vadd.f32 %v2401, %v2127
  %v2403 = vadd.f32 %v2402, %v2128
  %v2404 = vadd.f32 %v2403, %v2129
  %v2405 = vadd.f32 %v2404, %v2130
  %v2406 = vadd.f32 %v2405, %v2131
  %v2407 = vadd.f32 %v2406, %v2132
  %v2408 = vrot.slane %v2407, 4
  %v2409 = vadd.f32 %v2407, %v2408
  %v2410 = vrot.slane %v2409, 2
  %v2411 = vadd.f32 %v2409, %v2410
  %v2412 = vrot.slane %v2411, 1
  %v2413 = vadd.f32 %v2411, %v2412
  %v2414 = vadd.f32 %v2133, %v2134
  %v2415 = vadd.f32 %v2414, %v2135
  %v2416 = vadd.f32 %v2415, %v2136
  %v2417 = vadd.f32 %v2416, %v2137
  %v2418 = vadd.f32 %v2417, %v2138
  %v2419 = vadd.f32 %v2418, %v2139
  %v2420 = vadd.f32 %v2419, %v2140
  %v2421 = vadd.f32 %v2420, %v2141
  %v2422 = vadd.f32 %v2421, %v2142
  %v2423 = vadd.f32 %v2422, %v2143
  %v2424 = vadd.f32 %v2423, %v2144
  %v2425 = vadd.f32 %v2424, %v2145
  %v2426 = vadd.f32 %v2425, %v2146
  %v2427 = vadd.f32 %v2426, %v2147
  %v2428 = vadd.f32 %v2427, %v2148
  %v2429 = vadd.f32 %v2428, %v2149
  %v2430 = vadd.f32 %v2429, %v2150
  %v2431 = vadd.f32 %v2430, %v2151
  %v2432 = vadd.f32 %v2431, %v2152
  %v2433 = vadd.f32 %v2432, %v2153
  %v2434 = vadd.f32 %v2433, %v2154
  %v2435 = vadd.f32 %v2434, %v2155
  %v2436 = vadd.f32 %v2435, %v2156
  %v2437 = vadd.f32 %v2436, %v2157
  %v2438 = vadd.f32 %v2437, %v2158
  %v2439 = vadd.f32 %v2438, %v2159
  %v2440 = vadd.f32 %v2439, %v2160
  %v2441 = vadd.f32 %v2440, %v2161
  %v2442 = vadd.f32 %v2441, %v2162
  %v2443 = vadd.f32 %v2442, %v2163
  %v2444 = vadd.f32 %v2443, %v2164
  %v2445 = vrot.slane %v2444, 4
  %v2446 = vadd.f32 %v2444, %v2445
  %v2447 = vrot.slane %v2446, 2
  %v2448 = vadd.f32 %v2446, %v2447
  %v2449 = vrot.slane %v2448, 1
  %v2450 = vadd.f32 %v2448, %v2449
  %v2451 = vadd.f32 %v2165, %v2166
  %v2452 = vadd.f32 %v2451, %v2167
  %v2453 = vadd.f32 %v2452, %v2168
  %v2454 = vadd.f32 %v2453, %v2169
  %v2455 = vadd.f32 %v2454, %v2170
  %v2456 = vadd.f32 %v2455, %v2171
  %v2457 = vadd.f32 %v2456, %v2172
  %v2458 = vadd.f32 %v2457, %v2173
  %v2459 = vadd.f32 %v2458, %v2174
  %v2460 = vadd.f32 %v2459, %v2175
  %v2461 = vadd.f32 %v2460, %v2176
  %v2462 = vadd.f32 %v2461, %v2177
  %v2463 = vadd.f32 %v2462, %v2178
  %v2464 = vadd.f32 %v2463, %v2179
  %v2465 = vadd.f32 %v2464, %v2180
  %v2466 = vadd.f32 %v2465, %v2181
  %v2467 = vadd.f32 %v2466, %v2182
  %v2468 = vadd.f32 %v2467, %v2183
  %v2469 = vadd.f32 %v2468, %v2184
  %v2470 = vadd.f32 %v2469, %v2185
  %v2471 = vadd.f32 %v2470, %v2186
  %v2472 = vadd.f32 %v2471, %v2187
  %v2473 = vadd.f32 %v2472, %v2188
  %v2474 = vadd.f32 %v2473, %v2189
  %v2475 = vadd.f32 %v2474, %v2190
  %v2476 = vadd.f32 %v2475, %v2191
  %v2477 = vadd.f32 %v2476, %v2192
  %v2478 = vadd.f32 %v2477, %v2193
  %v2479 = vadd.f32 %v2478, %v2194
  %v2480 = vadd.f32 %v2479, %v2195
  %v2481 = vadd.f32 %v2480, %v2196
  %v2482 = vrot.slane %v2481, 4
  %v2483 = vadd.f32 %v2481, %v2482
  %v2484 = vrot.slane %v2483, 2
  %v2485 = vadd.f32 %v2483, %v2484
  %v2486 = vrot.slane %v2485, 1
  %v2487 = vadd.f32 %v2485, %v2486
  %v2488 = vadd.f32 %v2197, %v2198
  %v2489 = vadd.f32 %v2488, %v2199
  %v2490 = vadd.f32 %v2489, %v2200
  %v2491 = vadd.f32 %v2490, %v2201
  %v2492 = vadd.f32 %v2491, %v2202
  %v2493 = vadd.f32 %v2492, %v2203
  %v2494 = vadd.f32 %v2493, %v2204
  %v2495 = vadd.f32 %v2494, %v2205
  %v2496 = vadd.f32 %v2495, %v2206
  %v2497 = vadd.f32 %v2496, %v2207
  %v2498 = vadd.f32 %v2497, %v2208
  %v2499 = vadd.f32 %v2498, %v2209
  %v2500 = vadd.f32 %v2499, %v2210
  %v2501 = vadd.f32 %v2500, %v2211
  %v2502 = vadd.f32 %v2501, %v2212
  %v2503 = vadd.f32 %v2502, %v2213
  %v2504 = vadd.f32 %v2503, %v2214
  %v2505 = vadd.f32 %v2504, %v2215
  %v2506 = vadd.f32 %v2505, %v2216
  %v2507 = vadd.f32 %v2506, %v2217
  %v2508 = vadd.f32 %v2507, %v2218
  %v2509 = vadd.f32 %v2508, %v2219
  %v2510 = vadd.f32 %v2509, %v2220
  %v2511 = vadd.f32 %v2510, %v2221
  %v2512 = vadd.f32 %v2511, %v2222
  %v2513 = vadd.f32 %v2512, %v2223
  %v2514 = vadd.f32 %v2513, %v2224
  %v2515 = vadd.f32 %v2514, %v2225
  %v2516 = vadd.f32 %v2515, %v2226
  %v2517 = vadd.f32 %v2516, %v2227
  %v2518 = vadd.f32 %v2517, %v2228
  %v2519 = vrot.slane %v2518, 4
  %v2520 = vadd.f32 %v2518, %v2519
  %v2521 = vrot.slane %v2520, 2
  %v2522 = vadd.f32 %v2520, %v2521
  %v2523 = vrot.slane %v2522, 1
  %v2524 = vadd.f32 %v2522, %v2523
  %v2525 = vrcp.pop 256.0
  %v2526 = vmul.f32 256.0, %v2525
  %v2527 = vsub.f32 1.0, %v2526
  %v2528 = vmul.f32 %v2525, %v2527
  %v2529 = vadd.f32 %v2525, %v2528
  %vm2530 = vweird.f32 %v2525
  %v2531 = vsel %vm2530, %v2525, %v2529
  %v2532 = vmul.f32 %v2265, %v2531
  %v2533 = vmul.f32 %v2302, %v2531
  %v2534 = vmul.f32 %v2339, %v2531
  %v2535 = vmul.f32 %v2376, %v2531
  %v2536 = vmul.f32 %v2413, %v2531
  %v2537 = vmul.f32 %v2450, %v2531
  %v2538 = vmul.f32 %v2487, %v2531
  %v2539 = vmul.f32 %v2524, %v2531
  %vm2548 = vcmask 1041409
  %v2549 = vsel %vm2548, %v2533, %v2532
  %vm2550 = vcmask 1042434
  %v2551 = vsel %vm2550, %v2534, %v2549
  %vm2552 = vcmask 1043459
  %v2553 = vsel %vm2552, %v2535, %v2551
  %vm2554 = vcmask 1044484
  %v2555 = vsel %vm2554, %v2536, %v2553
  %vm2556 = vcmask 1045509
  %v2557 = vsel %vm2556, %v2537, %v2555
  %vm2558 = vcmask 1046534
  %v2559 = vsel %vm2558, %v2538, %v2557
  %vm2560 = vcmask 1047559
  %v2561 = vsel %vm2560, %v2539, %v2559
  %2563 = vst [vmem:[%s3] sm:$0xff] %v2561
  // Predicated region
  $region14: #{model_forward_aleatoric.2} parent=0 // pred_check
    _
  $region15: #{model_forward_aleatoric.2} parent=0 // pred_check_branch
    %2565 = sbr.rel (0) target = $region17
  $region16: #{model_forward_aleatoric.2} parent=0 // pred_region
    _
  $region17: #{model_forward_aleatoric.2} parent=0 // pred_fallthru
    _
  // Predicated region
  $region18: #{model_forward_aleatoric.2} parent=0 // pred_check
    _
  $region19: #{model_forward_aleatoric.2} parent=0 // pred_check_branch
    %2567 = sbr.rel (0) target = $region21
  $region20: #{model_forward_aleatoric.2} parent=0 // pred_region
    _
  $region21: #{model_forward_aleatoric.2} parent=0 // pred_fallthru
    _

</llo_original>
